<compile_context>
chip_gen: v5e
topology: v5e:2x2
jax: 0.10.0
libtpu: 0.0.40
codegen_flags: <defaults>
</compile_context>

<pallas_src>
import jax
import jax.numpy as jnp
import numpy as np
from jax import lax
from jax.experimental import pallas as pl
from jax.experimental.pallas import tpu as pltpu

KERNEL_SIZE = 7
PAD = 3  # kernel_size == 7 -> padding 3


def _scatter_indices(H, W):
    """Static (row, col, tap) indices of the banded conv-scatter matrix S.

    S[ci*HW + p, q] accumulates weight[0, ci, ky, kx] for every tap (ky, kx)
    that maps input pixel p = hi*W + wi onto output pixel q = h*W + w.  The
    conv's zero padding (row and column validity) is folded in by dropping
    out-of-bounds taps, so  acc = [max_pool | mean_pool] @ S  reproduces
    PyTorch's cross-correlation exactly (no kernel flip).
    """
    HW = H * W
    q = np.arange(HW, dtype=np.int64)
    h, w = q // W, q % W
    rows, cols, taps = [], [], []
    for ci in range(2):
        for ky in range(KERNEL_SIZE):
            for kx in range(KERNEL_SIZE):
                hi = h + ky - PAD
                wi = w + kx - PAD
                valid = (hi >= 0) & (hi < H) & (wi >= 0) & (wi < W)
                rows.append((ci * HW + hi * W + wi)[valid])
                cols.append(q[valid])
                tap = ci * KERNEL_SIZE * KERNEL_SIZE + ky * KERNEL_SIZE + kx
                taps.append(np.full(int(valid.sum()), tap, dtype=np.int64))
    return (np.concatenate(rows).astype(np.int32),
            np.concatenate(cols).astype(np.int32),
            np.concatenate(taps).astype(np.int32))


def _vmem_budget_bytes():
    """Per-step VMEM budget (blocks + resident S + temps), per chip generation."""
    try:
        cap = pltpu.get_tpu_info().vmem_capacity_bytes
    except Exception:
        cap = 64 << 20  # assume the smallest (v7x per-core) if the query fails
    # ~3/8 of physical VMEM, capped: v7x (64 MiB) -> 24 MiB, v5e/v6e -> 28 MiB.
    return int(min(28 << 20, max(8 << 20, (cap * 3) // 8)))


def _plan_batch(N, C, HW, itemsize, s_bytes):
    """Images per grid step (multiple of 8), padded batch size, VMEM limit."""
    budget = _vmem_budget_bytes()
    # Per image: double-buffered in + out blocks plus f32/bf16 temporaries.
    per_image = 2 * 2 * C * HW * itemsize + 16 * HW * 4
    avail = max(budget - s_bytes, per_image)
    nb = max(8, (avail // per_image) // 8 * 8)
    if N >= 16:
        # Keep >= 2 grid steps so the batch axis can shard across v7x's 2 cores.
        nb = min(nb, max(8, ((N + 1) // 2 // 8) * 8))
    nb = int(min(nb, max(8, pl.cdiv(N, 8) * 8)))   # never exceed the padded batch
    n_pad = int(pl.cdiv(N, nb) * nb)
    vmem_limit = int(min(32 << 20, max(16 << 20, budget + (4 << 20))))
    return nb, n_pad, vmem_limit


def _spatial_attention_kernel(s_hi_ref, s_lo_ref, x_ref, o_ref):
    # s_hi/s_lo: (2*HW, HW) bf16 resident VMEM — (hi, lo) split of the banded
    #            conv-scatter matrix (weights + boundary handling folded in).
    # x_ref:     (NB, C, HW) input block (lane-dense view of (NB, C, H, W)).
    # o_ref:     (NB, C, HW) output block.
    x = x_ref[...]                                            # read once, input dtype
    # Channel pooling (torch.max / torch.mean over dim=1); mean accumulated in f32.
    max_pool = jnp.max(x, axis=1).astype(jnp.float32)                  # (NB, HW)
    mean_pool = jnp.mean(x.astype(jnp.float32), axis=1)                # (NB, HW)
    pooled = jnp.concatenate([max_pool, mean_pool], axis=-1)           # (NB, 2*HW)

    # 7x7 depth-2 conv as MXU matmuls.  The explicit (hi, lo) bf16 split keeps
    # ~f32 accuracy (3-pass) while using the native bf16 x bf16 -> f32 MXU mode.
    p_hi = pooled.astype(jnp.bfloat16)
    p_lo = (pooled - p_hi.astype(jnp.float32)).astype(jnp.bfloat16)
    acc = jnp.dot(p_hi, s_hi_ref[...], preferred_element_type=jnp.float32)
    acc += jnp.dot(p_hi, s_lo_ref[...], preferred_element_type=jnp.float32)
    acc += jnp.dot(p_lo, s_hi_ref[...], preferred_element_type=jnp.float32)

    att = 1.0 / (1.0 + jnp.exp(-acc))                         # sigmoid, (NB, HW) f32
    # Gate in the input dtype: no second long-lived f32 copy of the block.
    o_ref[...] = (x * att[:, None, :].astype(x.dtype)).astype(o_ref.dtype)


def spatial_attention(x, weight):
    """x: (N, C, H, W); weight: (1, 2, 7, 7) conv1 weight (no bias)."""
    N, C, H, W = x.shape
    HW = H * W
    assert weight.shape == (1, 2, KERNEL_SIZE, KERNEL_SIZE)
    itemsize = jnp.dtype(x.dtype).itemsize

    # Banded conv-scatter matrix (weights + boundary masks), built once, then
    # split into (hi, lo) bf16 parts for the in-kernel 3-pass MXU matmul.
    rows, cols, taps = _scatter_indices(H, W)
    w_flat = weight.reshape(-1).astype(jnp.float32)                    # (98,)
    S = jnp.zeros((2 * HW, HW), jnp.float32).at[rows, cols].add(w_flat[taps])
    S_hi = S.astype(jnp.bfloat16)
    S_lo = (S - S_hi.astype(jnp.float32)).astype(jnp.bfloat16)
    s_bytes = 2 * (2 * HW * HW * 2)                                    # both bf16 copies

    nb, n_pad, vmem_limit = _plan_batch(N, C, HW, itemsize, s_bytes)

    # Lane-dense view; pad the batch so NB (a multiple of 8) divides it.
    x_flat = x.reshape(N, C, HW)
    if n_pad != N:
        x_flat = jnp.pad(x_flat, ((0, n_pad - N), (0, 0), (0, 0)))

    flops = n_pad * (12 * HW * HW + 3 * C * HW + 12 * HW)
    bytes_accessed = 2 * n_pad * C * HW * itemsize + s_bytes

    out_flat = pl.pallas_call(
        _spatial_attention_kernel,
        out_shape=jax.ShapeDtypeStruct((n_pad, C, HW), x.dtype),
        grid=(n_pad // nb,),
        in_specs=[
            pl.BlockSpec((2 * HW, HW), lambda n: (0, 0)),      # S_hi (resident)
            pl.BlockSpec((2 * HW, HW), lambda n: (0, 0)),      # S_lo (resident)
            pl.BlockSpec((nb, C, HW), lambda n: (n, 0, 0)),    # x block
        ],
        out_specs=pl.BlockSpec((nb, C, HW), lambda n: (n, 0, 0)),
        compiler_params=pltpu.CompilerParams(
            dimension_semantics=("parallel",),
            vmem_limit_bytes=vmem_limit),
        cost_estimate=pl.CostEstimate(
            flops=flops, transcendentals=n_pad * HW,
            bytes_accessed=bytes_accessed),
    )(S_hi, S_lo, x_flat)

    return out_flat[:N].reshape(N, C, H, W)


def _reference(x, weight):
    """Pure-JAX reference matching the PyTorch forward (full-precision conv)."""
    max_pool = jnp.max(x, axis=1, keepdims=True)
    mean_pool = jnp.mean(x, axis=1, keepdims=True)
    pol = jnp.concatenate([max_pool, mean_pool], axis=1)               # (N, 2, H, W)
    out = lax.conv_general_dilated(
        pol, weight, window_strides=(1, 1), padding=[(PAD, PAD), (PAD, PAD)],
        dimension_numbers=("NCHW", "OIHW", "NCHW"),
        precision=lax.Precision.HIGHEST)
    return jax.nn.sigmoid(out) * x


if __name__ == "__main__":
    key = jax.random.PRNGKey(0)
    kx, kw = jax.random.split(key)

    # Small shapes consistent with the module: batch=2, channels=4, spatial=16.
    x = jax.random.normal(kx, (2, 4, 16, 16), dtype=jnp.float32)
    # Asymmetric conv1 weight (1, 2, 7, 7), no bias — catches any tap flip.
    weight = jax.random.normal(kw, (1, 2, 7, 7), dtype=jnp.float32) * 0.1

    out = jax.block_until_ready(spatial_attention(x, weight))
    ref = jax.block_until_ready(_reference(x, weight))

    assert out.shape == x.shape and out.dtype == x.dtype
    err = float(np.max(np.abs(np.asarray(out) - np.asarray(ref))))
    assert np.allclose(np.asarray(out), np.asarray(ref), rtol=1e-4, atol=1e-4), (
        "max abs err %.3e" % err)

    print("KERNEL_OK")
</pallas_src>

<mosaic_0001>
module attributes {stable_mosaic.version = 11 : i64} {
  func.func @_spatial_attention_kernel(%arg0: i32, %arg1: memref<512x256xbf16, #tpu.memory_space<vmem>>, %arg2: memref<512x256xbf16, #tpu.memory_space<vmem>>, %arg3: memref<8x4x256xf32, #tpu.memory_space<vmem>>, %arg4: memref<8x4x256xf32, #tpu.memory_space<vmem>>) attributes {dimension_semantics = [#tpu.dimension_semantics<parallel>], iteration_bounds = array<i64: 1>, scalar_prefetch = 0 : i64, scratch_operands = 0 : i64, tpu.core_type = #tpu.core_type<tc>, window_params = [{pipeline_mode = #tpu.pipeline_mode<synchronous>, transform_indices = @transform_0, window_bounds = array<i64: 512, 256>}, {pipeline_mode = #tpu.pipeline_mode<synchronous>, transform_indices = @transform_1, window_bounds = array<i64: 512, 256>}, {transform_indices = @transform_2, window_bounds = array<i64: 8, 4, 256>}, {transform_indices = @transform_3, window_bounds = array<i64: 8, 4, 256>}]} {
    %c0 = arith.constant 0 : index
    %c0_0 = arith.constant 0 : index
    %c0_1 = arith.constant 0 : index
    %0 = vector.load %arg3[%c0, %c0_0, %c0_1] : memref<8x4x256xf32, #tpu.memory_space<vmem>>, vector<8x4x256xf32>
    %cst = arith.constant dense<0xFF800000> : vector<8x256xf32>
    %1 = vector.multi_reduction <maximumf>, %0, %cst [1] : vector<8x4x256xf32> to vector<8x256xf32>
    %cst_2 = arith.constant dense<0.000000e+00> : vector<8x256xf32>
    %2 = vector.multi_reduction <add>, %0, %cst_2 [1] : vector<8x4x256xf32> to vector<8x256xf32>
    %cst_3 = arith.constant 4.000000e+00 : f32
    %3 = vector.broadcast %cst_3 : f32 to vector<8x256xf32>
    %4 = arith.divf %2, %3 : vector<8x256xf32>
    %5 = tpu.concatenate %1, %4 in 1 : vector<8x256xf32>, vector<8x256xf32> -> vector<8x512xf32>
    %6 = arith.truncf %5 : vector<8x512xf32> to vector<8x512xbf16>
    %7 = arith.extf %6 : vector<8x512xbf16> to vector<8x512xf32>
    %8 = arith.subf %5, %7 : vector<8x512xf32>
    %9 = arith.truncf %8 : vector<8x512xf32> to vector<8x512xbf16>
    %c0_4 = arith.constant 0 : index
    %c0_5 = arith.constant 0 : index
    %10 = vector.load %arg1[%c0_4, %c0_5] : memref<512x256xbf16, #tpu.memory_space<vmem>>, vector<512x256xbf16>
    %cst_6 = arith.constant dense<0.000000e+00> : vector<8x256xf32>
    %11 = tpu.matmul %6, %10, %cst_6 {dimension_numbers = #tpu.dot_dimension_numbers<[1], [0], [0], [1], [0, 0, 1, 1], [], []>} : vector<8x512xbf16>, vector<512x256xbf16>, vector<8x256xf32> -> vector<8x256xf32>
    %c0_7 = arith.constant 0 : index
    %c0_8 = arith.constant 0 : index
    %12 = vector.load %arg2[%c0_7, %c0_8] : memref<512x256xbf16, #tpu.memory_space<vmem>>, vector<512x256xbf16>
    %cst_9 = arith.constant dense<0.000000e+00> : vector<8x256xf32>
    %13 = tpu.matmul %6, %12, %cst_9 {dimension_numbers = #tpu.dot_dimension_numbers<[1], [0], [0], [1], [0, 0, 1, 1], [], []>} : vector<8x512xbf16>, vector<512x256xbf16>, vector<8x256xf32> -> vector<8x256xf32>
    %14 = arith.addf %11, %13 : vector<8x256xf32>
    %c0_10 = arith.constant 0 : index
    %c0_11 = arith.constant 0 : index
    %15 = vector.load %arg1[%c0_10, %c0_11] : memref<512x256xbf16, #tpu.memory_space<vmem>>, vector<512x256xbf16>
    %cst_12 = arith.constant dense<0.000000e+00> : vector<8x256xf32>
    %16 = tpu.matmul %9, %15, %cst_12 {dimension_numbers = #tpu.dot_dimension_numbers<[1], [0], [0], [1], [0, 0, 1, 1], [], []>} : vector<8x512xbf16>, vector<512x256xbf16>, vector<8x256xf32> -> vector<8x256xf32>
    %17 = arith.addf %14, %16 : vector<8x256xf32>
    %cst_13 = arith.constant 0.000000e+00 : f32
    %18 = vector.broadcast %cst_13 : f32 to vector<8x256xf32>
    %19 = arith.subf %18, %17 : vector<8x256xf32>
    %20 = math.exp %19 : vector<8x256xf32>
    %cst_14 = arith.constant 1.000000e+00 : f32
    %21 = vector.broadcast %cst_14 : f32 to vector<8x256xf32>
    %22 = arith.addf %21, %20 : vector<8x256xf32>
    %cst_15 = arith.constant 1.000000e+00 : f32
    %23 = vector.broadcast %cst_15 : f32 to vector<8x256xf32>
    %24 = arith.divf %23, %22 : vector<8x256xf32>
    %25 = vector.shape_cast %24 : vector<8x256xf32> to vector<8x1x256xf32>
    %26 = vector.broadcast %25 : vector<8x1x256xf32> to vector<8x4x256xf32>
    %27 = arith.mulf %0, %26 : vector<8x4x256xf32>
    %c0_16 = arith.constant 0 : index
    %c0_17 = arith.constant 0 : index
    %c0_18 = arith.constant 0 : index
    %28 = vector.load %arg4[%c0_16, %c0_17, %c0_18] : memref<8x4x256xf32, #tpu.memory_space<vmem>>, vector<8x4x256xf32>
    tpu.vector_store %arg4[%c0_16, %c0_17, %c0_18], %27 {strides = array<i32>} : memref<8x4x256xf32, #tpu.memory_space<vmem>>, vector<8x4x256xf32>,
    return
  }
  func.func @transform_0(%arg0: i32) -> (i32, i32) {
    %c0_i32 = arith.constant 0 : i32
    %c0_i32_0 = arith.constant 0 : i32
    %c0_i32_1 = arith.constant 0 : i32
    return %c0_i32, %c0_i32_0 : i32, i32
  }
  func.func @transform_1(%arg0: i32) -> (i32, i32) {
    %c0_i32 = arith.constant 0 : i32
    %c0_i32_0 = arith.constant 0 : i32
    %c0_i32_1 = arith.constant 0 : i32
    return %c0_i32, %c0_i32_0 : i32, i32
  }
  func.func @transform_2(%arg0: i32) -> (i32, i32, i32) {
    %c0_i32 = arith.constant 0 : i32
    %c0_i32_0 = arith.constant 0 : i32
    %c0_i32_1 = arith.constant 0 : i32
    return %arg0, %c0_i32, %c0_i32_0 : i32, i32, i32
  }
  func.func @transform_3(%arg0: i32) -> (i32, i32, i32) {
    %c0_i32 = arith.constant 0 : i32
    %c0_i32_0 = arith.constant 0 : i32
    %c0_i32_1 = arith.constant 0 : i32
    return %arg0, %c0_i32, %c0_i32_0 : i32, i32, i32
  }
}

</mosaic_0001>

<llo_original>
// kernel: tpu_custom_call.1
$region0: #{tpu_custom_call.1}
  #allocation0 [shape = 'u32[]', space=smem, size = 0x4, offset = 0x4, fixed_abs, tag = 'smem constant byte address 0x4 - core index']
  #allocation1 [shape = 'u32[72,128]{1,0:T(1,128)}', space=vmem, size = 0x9000, scoped, tag = 'internal scratch']
  %s0 = inlined_call_operand.hbm [shape: bf16[512,256], index: 0, kind: input, shape index: {}]
  %s1 = inlined_call_operand.hbm [shape: bf16[512,256], index: 1, kind: input, shape index: {}]
  %s2 = inlined_call_operand.hbm [shape: f32[8,4,256], index: 2, kind: input, shape index: {}]
  %s3 = inlined_call_operand.hbm [shape: f32[8,4,256], index: 3, kind: output, shape index: {}]
  %s4 = sld [smem:[#allocation0]]
  $region34: #{tpu_custom_call.1} parent=0
    _
  %s6 = ssub.s32 1, %s4
  %s7 = scalar_select 0, %s6, %s4
  $region1: #{tpu_custom_call.1} parent=0
    #allocation2 [shape = 'u8[262144]{0}', space=vmem, size = 0x40000, scoped, tag = 'input window, operand 0, single buffered']
    #allocation3 [shape = 's32[1]{0}', space=sflag, size = 0x4, scoped, tag = 'scoped memory for tpu_custom_call.1']
    #allocation4 [shape = 's32[1]{0}', space=sflag, size = 0x4, scoped, tag = 'scoped memory for tpu_custom_call.1']
    #allocation5 [shape = 'u8[262144]{0}', space=vmem, size = 0x40000, scoped, tag = 'input window, operand 1, single buffered']
    #allocation6 [shape = 's32[1]{0}', space=sflag, size = 0x4, scoped, tag = 'scoped memory for tpu_custom_call.1']
    #allocation7 [shape = 'u8[32768]{0}', space=vmem, size = 0x8000, scoped, tag = 'input window, operand 2, single buffered']
    #allocation8 [shape = 'u8[32768]{0}', space=vmem, size = 0x8000, scoped, tag = 'output window, operand 0, single buffered']
    %8 = vsyncpa [#allocation3], 0
    %9 = vsyncpa [#allocation6], 0
    %10 = vsyncpa [#allocation4], 0
    // Predicated region
    $region2: #{tpu_custom_call.1} parent=1 // pred_check
      _
    $region3: #{tpu_custom_call.1} parent=1 // pred_check_branch
      %12 = sbr.rel (0) target = $region5
    $region4: #{tpu_custom_call.1} parent=1 // pred_region
      %14 = vsyncadd [#allocation3], 0
      %s15 = sshll.u32 %s0, 4
      %s16 = int_to_ptr.hbm [resolvable:$true] %s15
      %s17 = sshll.u32 [#allocation2], 4
      %s18 = int_to_ptr.vmem [resolvable:$true] %s17
      %23 = dma.hbm_to_vmem [thread:$0]  %s16, 8192, %s18, [#allocation3], 128, 128, 8
    $region5: #{tpu_custom_call.1} parent=1 // pred_fallthru
      _
    // Predicated region
    $region6: #{tpu_custom_call.1} parent=1 // pred_check
      _
    $region7: #{tpu_custom_call.1} parent=1 // pred_check_branch
      %25 = sbr.rel (0) target = $region9
    $region8: #{tpu_custom_call.1} parent=1 // pred_region
      %27 = vsyncadd [#allocation6], 0
      %s28 = sshll.u32 %s1, 4
      %s29 = int_to_ptr.hbm [resolvable:$true] %s28
      %s30 = sshll.u32 [#allocation5], 4
      %s31 = int_to_ptr.vmem [resolvable:$true] %s30
      %36 = dma.hbm_to_vmem [thread:$0]  %s29, 8192, %s31, [#allocation6], 128, 128, 8
    $region9: #{tpu_custom_call.1} parent=1 // pred_fallthru
      _
    // Predicated region
    $region10: #{tpu_custom_call.1} parent=1 // pred_check
      _
    $region11: #{tpu_custom_call.1} parent=1 // pred_check_branch
      %38 = sbr.rel (0) target = $region13
    $region12: #{tpu_custom_call.1} parent=1 // pred_region
      %40 = vsyncadd [#allocation6], 0
      %s41 = sshll.u32 %s2, 4
      %s42 = int_to_ptr.hbm [resolvable:$true] %s41
      %s43 = sshll.u32 [#allocation7], 4
      %s44 = int_to_ptr.vmem [resolvable:$true] %s43
      %49 = dma.hbm_to_vmem [thread:$0]  %s42, 1024, %s44, [#allocation6], 128, 128, 8
    $region13: #{tpu_custom_call.1} parent=1 // pred_fallthru
      _
    // Predicated region
    $region14: #{tpu_custom_call.1} parent=1 // pred_check
      _
    $region15: #{tpu_custom_call.1} parent=1 // pred_check_branch
      %51 = sbr.rel (0) target = $region17
    $region16: #{tpu_custom_call.1} parent=1 // pred_region
      %53 = dma.done [#allocation3], 8192
    $region17: #{tpu_custom_call.1} parent=1 // pred_fallthru
      _
    // Predicated region
    $region18: #{tpu_custom_call.1} parent=1 // pred_check
      _
    $region19: #{tpu_custom_call.1} parent=1 // pred_check_branch
      %55 = sbr.rel (0) target = $region21
    $region20: #{tpu_custom_call.1} parent=1 // pred_region
      %57 = dma.done [#allocation6], 8192
    $region21: #{tpu_custom_call.1} parent=1 // pred_fallthru
      _
    // Predicated region
    $region22: #{tpu_custom_call.1} parent=1 // pred_check
      _
    $region23: #{tpu_custom_call.1} parent=1 // pred_check_branch
      %59 = sbr.rel (0) target = $region25
    $region24: #{tpu_custom_call.1} parent=1 // pred_region
      %61 = dma.done [#allocation6], 1024
    $region25: #{tpu_custom_call.1} parent=1 // pred_fallthru
      _
    %v62 = vld [vmem:[#allocation7] sm:$0xff]
    %v63 = vld [vmem:[#allocation7 + $0x8] sm:$0xff]
    %v64 = vld [vmem:[#allocation7 + $0x10] sm:$0xff]
    %v65 = vld [vmem:[#allocation7 + $0x18] sm:$0xff]
    %v66 = vld [vmem:[#allocation7 + $0x20] sm:$0xff]
    %v67 = vld [vmem:[#allocation7 + $0x28] sm:$0xff]
    %v68 = vld [vmem:[#allocation7 + $0x30] sm:$0xff]
    %v69 = vld [vmem:[#allocation7 + $0x38] sm:$0xff]
    %78 = vst [vmem:[#allocation1] ss:$2 sm:$0xff] %v62
    %v79 = vld.sshfl [vmem:[#allocation1] sm:$0xff pattern:$0x75316420]
    %v80 = vld.sshfl [vmem:[#allocation1 + $0x8] sm:$0xff pattern:$0x75316420]
    %s81 = scalar_lea.vmem [#allocation1], 16
    %82 = vst [vmem:[%s81] ss:$2 sm:$0xff] %v63
    %v83 = vld.sshfl [vmem:[#allocation1 + $0x10] sm:$0xff pattern:$0x75316420]
    %v84 = vld.sshfl [vmem:[#allocation1 + $0x18] sm:$0xff pattern:$0x75316420]
    %s85 = scalar_lea.vmem [#allocation1], 32
    %86 = vst [vmem:[%s85] ss:$2 sm:$0xff] %v64
    %v87 = vld.sshfl [vmem:[#allocation1 + $0x20] sm:$0xff pattern:$0x75316420]
    %v88 = vld.sshfl [vmem:[#allocation1 + $0x28] sm:$0xff pattern:$0x75316420]
    %s89 = scalar_lea.vmem [#allocation1], 48
    %90 = vst [vmem:[%s89] ss:$2 sm:$0xff] %v65
    %v91 = vld.sshfl [vmem:[#allocation1 + $0x30] sm:$0xff pattern:$0x75316420]
    %v92 = vld.sshfl [vmem:[#allocation1 + $0x38] sm:$0xff pattern:$0x75316420]
    %93 = vst [vmem:[#allocation1] ss:$2 sm:$0xff] %v66
    %v94 = vld.sshfl [vmem:[#allocation1] sm:$0xff pattern:$0x75316420]
    %v95 = vld.sshfl [vmem:[#allocation1 + $0x8] sm:$0xff pattern:$0x75316420]
    %96 = vst [vmem:[%s81] ss:$2 sm:$0xff] %v67
    %v97 = vld.sshfl [vmem:[#allocation1 + $0x10] sm:$0xff pattern:$0x75316420]
    %v98 = vld.sshfl [vmem:[#allocation1 + $0x18] sm:$0xff pattern:$0x75316420]
    %99 = vst [vmem:[%s85] ss:$2 sm:$0xff] %v68
    %v100 = vld.sshfl [vmem:[#allocation1 + $0x20] sm:$0xff pattern:$0x75316420]
    %v101 = vld.sshfl [vmem:[#allocation1 + $0x28] sm:$0xff pattern:$0x75316420]
    %102 = vst [vmem:[%s89] ss:$2 sm:$0xff] %v69
    %v103 = vld.sshfl [vmem:[#allocation1 + $0x30] sm:$0xff pattern:$0x75316420]
    %v104 = vld.sshfl [vmem:[#allocation1 + $0x38] sm:$0xff pattern:$0x75316420]
    %vm121 = vcmask 1043456
    %v122 = vsel %vm121, %v79, -inf
    %v123 = vrot.slane %v122, 4
    %v124 = vmax.f32 %v122, %v123
    %v125 = vrot.slane %v124, 2
    %v126 = vmax.f32 %v124, %v125
    %v127 = vrot.slane %v126, 1
    %v128 = vmax.f32 %v126, %v127
    %v129 = vsel %vm121, %v80, -inf
    %v130 = vrot.slane %v129, 4
    %v131 = vmax.f32 %v129, %v130
    %v132 = vrot.slane %v131, 2
    %v133 = vmax.f32 %v131, %v132
    %v134 = vrot.slane %v133, 1
    %v135 = vmax.f32 %v133, %v134
    %v136 = vsel %vm121, %v83, -inf
    %v137 = vrot.slane %v136, 4
    %v138 = vmax.f32 %v136, %v137
    %v139 = vrot.slane %v138, 2
    %v140 = vmax.f32 %v138, %v139
    %v141 = vrot.slane %v140, 1
    %v142 = vmax.f32 %v140, %v141
    %v143 = vsel %vm121, %v84, -inf
    %v144 = vrot.slane %v143, 4
    %v145 = vmax.f32 %v143, %v144
    %v146 = vrot.slane %v145, 2
    %v147 = vmax.f32 %v145, %v146
    %v148 = vrot.slane %v147, 1
    %v149 = vmax.f32 %v147, %v148
    %v150 = vsel %vm121, %v87, -inf
    %v151 = vrot.slane %v150, 4
    %v152 = vmax.f32 %v150, %v151
    %v153 = vrot.slane %v152, 2
    %v154 = vmax.f32 %v152, %v153
    %v155 = vrot.slane %v154, 1
    %v156 = vmax.f32 %v154, %v155
    %v157 = vsel %vm121, %v88, -inf
    %v158 = vrot.slane %v157, 4
    %v159 = vmax.f32 %v157, %v158
    %v160 = vrot.slane %v159, 2
    %v161 = vmax.f32 %v159, %v160
    %v162 = vrot.slane %v161, 1
    %v163 = vmax.f32 %v161, %v162
    %v164 = vsel %vm121, %v91, -inf
    %v165 = vrot.slane %v164, 4
    %v166 = vmax.f32 %v164, %v165
    %v167 = vrot.slane %v166, 2
    %v168 = vmax.f32 %v166, %v167
    %v169 = vrot.slane %v168, 1
    %v170 = vmax.f32 %v168, %v169
    %v171 = vsel %vm121, %v92, -inf
    %v172 = vrot.slane %v171, 4
    %v173 = vmax.f32 %v171, %v172
    %v174 = vrot.slane %v173, 2
    %v175 = vmax.f32 %v173, %v174
    %v176 = vrot.slane %v175, 1
    %v177 = vmax.f32 %v175, %v176
    %v178 = vsel %vm121, %v94, -inf
    %v179 = vrot.slane %v178, 4
    %v180 = vmax.f32 %v178, %v179
    %v181 = vrot.slane %v180, 2
    %v182 = vmax.f32 %v180, %v181
    %v183 = vrot.slane %v182, 1
    %v184 = vmax.f32 %v182, %v183
    %v185 = vsel %vm121, %v95, -inf
    %v186 = vrot.slane %v185, 4
    %v187 = vmax.f32 %v185, %v186
    %v188 = vrot.slane %v187, 2
    %v189 = vmax.f32 %v187, %v188
    %v190 = vrot.slane %v189, 1
    %v191 = vmax.f32 %v189, %v190
    %v192 = vsel %vm121, %v97, -inf
    %v193 = vrot.slane %v192, 4
    %v194 = vmax.f32 %v192, %v193
    %v195 = vrot.slane %v194, 2
    %v196 = vmax.f32 %v194, %v195
    %v197 = vrot.slane %v196, 1
    %v198 = vmax.f32 %v196, %v197
    %v199 = vsel %vm121, %v98, -inf
    %v200 = vrot.slane %v199, 4
    %v201 = vmax.f32 %v199, %v200
    %v202 = vrot.slane %v201, 2
    %v203 = vmax.f32 %v201, %v202
    %v204 = vrot.slane %v203, 1
    %v205 = vmax.f32 %v203, %v204
    %v206 = vsel %vm121, %v100, -inf
    %v207 = vrot.slane %v206, 4
    %v208 = vmax.f32 %v206, %v207
    %v209 = vrot.slane %v208, 2
    %v210 = vmax.f32 %v208, %v209
    %v211 = vrot.slane %v210, 1
    %v212 = vmax.f32 %v210, %v211
    %v213 = vsel %vm121, %v101, -inf
    %v214 = vrot.slane %v213, 4
    %v215 = vmax.f32 %v213, %v214
    %v216 = vrot.slane %v215, 2
    %v217 = vmax.f32 %v215, %v216
    %v218 = vrot.slane %v217, 1
    %v219 = vmax.f32 %v217, %v218
    %v220 = vsel %vm121, %v103, -inf
    %v221 = vrot.slane %v220, 4
    %v222 = vmax.f32 %v220, %v221
    %v223 = vrot.slane %v222, 2
    %v224 = vmax.f32 %v222, %v223
    %v225 = vrot.slane %v224, 1
    %v226 = vmax.f32 %v224, %v225
    %v227 = vsel %vm121, %v104, -inf
    %v228 = vrot.slane %v227, 4
    %v229 = vmax.f32 %v227, %v228
    %v230 = vrot.slane %v229, 2
    %v231 = vmax.f32 %v229, %v230
    %v232 = vrot.slane %v231, 1
    %v233 = vmax.f32 %v231, %v232
    %234 = vst [vmem:[#allocation1] ss:$2 sm:$0xff] %v62
    %v235 = vld.sshfl [vmem:[#allocation1] sm:$0xff pattern:$0x75316420]
    %v236 = vld.sshfl [vmem:[#allocation1 + $0x8] sm:$0xff pattern:$0x75316420]
    %s237 = scalar_lea.vmem [#allocation1], 16
    %238 = vst [vmem:[%s237] ss:$2 sm:$0xff] %v63
    %v239 = vld.sshfl [vmem:[#allocation1 + $0x10] sm:$0xff pattern:$0x75316420]
    %v240 = vld.sshfl [vmem:[#allocation1 + $0x18] sm:$0xff pattern:$0x75316420]
    %s241 = scalar_lea.vmem [#allocation1], 32
    %242 = vst [vmem:[%s241] ss:$2 sm:$0xff] %v64
    %v243 = vld.sshfl [vmem:[#allocation1 + $0x20] sm:$0xff pattern:$0x75316420]
    %v244 = vld.sshfl [vmem:[#allocation1 + $0x28] sm:$0xff pattern:$0x75316420]
    %s245 = scalar_lea.vmem [#allocation1], 48
    %246 = vst [vmem:[%s245] ss:$2 sm:$0xff] %v65
    %v247 = vld.sshfl [vmem:[#allocation1 + $0x30] sm:$0xff pattern:$0x75316420]
    %v248 = vld.sshfl [vmem:[#allocation1 + $0x38] sm:$0xff pattern:$0x75316420]
    %249 = vst [vmem:[#allocation1] ss:$2 sm:$0xff] %v66
    %v250 = vld.sshfl [vmem:[#allocation1] sm:$0xff pattern:$0x75316420]
    %v251 = vld.sshfl [vmem:[#allocation1 + $0x8] sm:$0xff pattern:$0x75316420]
    %252 = vst [vmem:[%s237] ss:$2 sm:$0xff] %v67
    %v253 = vld.sshfl [vmem:[#allocation1 + $0x10] sm:$0xff pattern:$0x75316420]
    %v254 = vld.sshfl [vmem:[#allocation1 + $0x18] sm:$0xff pattern:$0x75316420]
    %255 = vst [vmem:[%s241] ss:$2 sm:$0xff] %v68
    %v256 = vld.sshfl [vmem:[#allocation1 + $0x20] sm:$0xff pattern:$0x75316420]
    %v257 = vld.sshfl [vmem:[#allocation1 + $0x28] sm:$0xff pattern:$0x75316420]
    %258 = vst [vmem:[%s245] ss:$2 sm:$0xff] %v69
    %v259 = vld.sshfl [vmem:[#allocation1 + $0x30] sm:$0xff pattern:$0x75316420]
    %v260 = vld.sshfl [vmem:[#allocation1 + $0x38] sm:$0xff pattern:$0x75316420]
    %v277 = vsel %vm121, %v235, 0.0
    %v278 = vrot.slane %v277, 4
    %v279 = vadd.f32 %v277, %v278
    %v280 = vrot.slane %v279, 2
    %v281 = vadd.f32 %v279, %v280
    %v282 = vrot.slane %v281, 1
    %v283 = vadd.f32 %v281, %v282
    %v284 = vsel %vm121, %v236, 0.0
    %v285 = vrot.slane %v284, 4
    %v286 = vadd.f32 %v284, %v285
    %v287 = vrot.slane %v286, 2
    %v288 = vadd.f32 %v286, %v287
    %v289 = vrot.slane %v288, 1
    %v290 = vadd.f32 %v288, %v289
    %v291 = vsel %vm121, %v239, 0.0
    %v292 = vrot.slane %v291, 4
    %v293 = vadd.f32 %v291, %v292
    %v294 = vrot.slane %v293, 2
    %v295 = vadd.f32 %v293, %v294
    %v296 = vrot.slane %v295, 1
    %v297 = vadd.f32 %v295, %v296
    %v298 = vsel %vm121, %v240, 0.0
    %v299 = vrot.slane %v298, 4
    %v300 = vadd.f32 %v298, %v299
    %v301 = vrot.slane %v300, 2
    %v302 = vadd.f32 %v300, %v301
    %v303 = vrot.slane %v302, 1
    %v304 = vadd.f32 %v302, %v303
    %v305 = vsel %vm121, %v243, 0.0
    %v306 = vrot.slane %v305, 4
    %v307 = vadd.f32 %v305, %v306
    %v308 = vrot.slane %v307, 2
    %v309 = vadd.f32 %v307, %v308
    %v310 = vrot.slane %v309, 1
    %v311 = vadd.f32 %v309, %v310
    %v312 = vsel %vm121, %v244, 0.0
    %v313 = vrot.slane %v312, 4
    %v314 = vadd.f32 %v312, %v313
    %v315 = vrot.slane %v314, 2
    %v316 = vadd.f32 %v314, %v315
    %v317 = vrot.slane %v316, 1
    %v318 = vadd.f32 %v316, %v317
    %v319 = vsel %vm121, %v247, 0.0
    %v320 = vrot.slane %v319, 4
    %v321 = vadd.f32 %v319, %v320
    %v322 = vrot.slane %v321, 2
    %v323 = vadd.f32 %v321, %v322
    %v324 = vrot.slane %v323, 1
    %v325 = vadd.f32 %v323, %v324
    %v326 = vsel %vm121, %v248, 0.0
    %v327 = vrot.slane %v326, 4
    %v328 = vadd.f32 %v326, %v327
    %v329 = vrot.slane %v328, 2
    %v330 = vadd.f32 %v328, %v329
    %v331 = vrot.slane %v330, 1
    %v332 = vadd.f32 %v330, %v331
    %v333 = vsel %vm121, %v250, 0.0
    %v334 = vrot.slane %v333, 4
    %v335 = vadd.f32 %v333, %v334
    %v336 = vrot.slane %v335, 2
    %v337 = vadd.f32 %v335, %v336
    %v338 = vrot.slane %v337, 1
    %v339 = vadd.f32 %v337, %v338
    %v340 = vsel %vm121, %v251, 0.0
    %v341 = vrot.slane %v340, 4
    %v342 = vadd.f32 %v340, %v341
    %v343 = vrot.slane %v342, 2
    %v344 = vadd.f32 %v342, %v343
    %v345 = vrot.slane %v344, 1
    %v346 = vadd.f32 %v344, %v345
    %v347 = vsel %vm121, %v253, 0.0
    %v348 = vrot.slane %v347, 4
    %v349 = vadd.f32 %v347, %v348
    %v350 = vrot.slane %v349, 2
    %v351 = vadd.f32 %v349, %v350
    %v352 = vrot.slane %v351, 1
    %v353 = vadd.f32 %v351, %v352
    %v354 = vsel %vm121, %v254, 0.0
    %v355 = vrot.slane %v354, 4
    %v356 = vadd.f32 %v354, %v355
    %v357 = vrot.slane %v356, 2
    %v358 = vadd.f32 %v356, %v357
    %v359 = vrot.slane %v358, 1
    %v360 = vadd.f32 %v358, %v359
    %v361 = vsel %vm121, %v256, 0.0
    %v362 = vrot.slane %v361, 4
    %v363 = vadd.f32 %v361, %v362
    %v364 = vrot.slane %v363, 2
    %v365 = vadd.f32 %v363, %v364
    %v366 = vrot.slane %v365, 1
    %v367 = vadd.f32 %v365, %v366
    %v368 = vsel %vm121, %v257, 0.0
    %v369 = vrot.slane %v368, 4
    %v370 = vadd.f32 %v368, %v369
    %v371 = vrot.slane %v370, 2
    %v372 = vadd.f32 %v370, %v371
    %v373 = vrot.slane %v372, 1
    %v374 = vadd.f32 %v372, %v373
    %v375 = vsel %vm121, %v259, 0.0
    %v376 = vrot.slane %v375, 4
    %v377 = vadd.f32 %v375, %v376
    %v378 = vrot.slane %v377, 2
    %v379 = vadd.f32 %v377, %v378
    %v380 = vrot.slane %v379, 1
    %v381 = vadd.f32 %v379, %v380
    %v382 = vsel %vm121, %v260, 0.0
    %v383 = vrot.slane %v382, 4
    %v384 = vadd.f32 %v382, %v383
    %v385 = vrot.slane %v384, 2
    %v386 = vadd.f32 %v384, %v385
    %v387 = vrot.slane %v386, 1
    %v388 = vadd.f32 %v386, %v387
    %v389 = vrcp.pop 4.0
    %v390 = vmul.f32 4.0, %v389
    %v391 = vsub.f32 1.0, %v390
    %v392 = vmul.f32 %v389, %v391
    %v393 = vadd.f32 %v389, %v392
    %vm394 = vweird.f32 %v389
    %v395 = vsel %vm394, %v389, %v393
    %v396 = vmul.f32 %v283, %v395
    %v397 = vmul.f32 %v290, %v395
    %v398 = vmul.f32 %v297, %v395
    %v399 = vmul.f32 %v304, %v395
    %v400 = vmul.f32 %v311, %v395
    %v401 = vmul.f32 %v318, %v395
    %v402 = vmul.f32 %v325, %v395
    %v403 = vmul.f32 %v332, %v395
    %v404 = vmul.f32 %v339, %v395
    %v405 = vmul.f32 %v346, %v395
    %v406 = vmul.f32 %v353, %v395
    %v407 = vmul.f32 %v360, %v395
    %v408 = vmul.f32 %v367, %v395
    %v409 = vmul.f32 %v374, %v395
    %v410 = vmul.f32 %v381, %v395
    %v411 = vmul.f32 %v388, %v395
    %vm428 = vcmask 1041409
    %v429 = vsel %vm428, %v142, %v128
    %vm430 = vcmask 1042434
    %v431 = vsel %vm430, %v156, %v429
    %vm432 = vcmask 1043459
    %v433 = vsel %vm432, %v170, %v431
    %vm434 = vcmask 1044484
    %v435 = vsel %vm434, %v184, %v433
    %vm436 = vcmask 1045509
    %v437 = vsel %vm436, %v198, %v435
    %vm438 = vcmask 1046534
    %v439 = vsel %vm438, %v212, %v437
    %vm440 = vcmask 1047559
    %v441 = vsel %vm440, %v226, %v439
    %v442 = vsel %vm428, %v149, %v135
    %v443 = vsel %vm430, %v163, %v442
    %v444 = vsel %vm432, %v177, %v443
    %v445 = vsel %vm434, %v191, %v444
    %v446 = vsel %vm436, %v205, %v445
    %v447 = vsel %vm438, %v219, %v446
    %v448 = vsel %vm440, %v233, %v447
    %v467 = vsel %vm428, %v398, %v396
    %v468 = vsel %vm430, %v400, %v467
    %v469 = vsel %vm432, %v402, %v468
    %v470 = vsel %vm434, %v404, %v469
    %v471 = vsel %vm436, %v406, %v470
    %v472 = vsel %vm438, %v408, %v471
    %v473 = vsel %vm440, %v410, %v472
    %v474 = vsel %vm428, %v399, %v397
    %v475 = vsel %vm430, %v401, %v474
    %v476 = vsel %vm432, %v403, %v475
    %v477 = vsel %vm434, %v405, %v476
    %v478 = vsel %vm436, %v407, %v477
    %v479 = vsel %vm438, %v409, %v478
    %v480 = vsel %vm440, %v411, %v479
    %v483 = vpack.c.bf16 %v448, %v441
    %v484 = vpack.c.bf16 %v480, %v473
    %v485 = vunpack.c.l.bf16 %v483
    %v486 = vunpack.c.h.bf16 %v483
    %v487 = vunpack.c.l.bf16 %v484
    %v488 = vunpack.c.h.bf16 %v484
    %v489 = vsub.f32 %v441, %v485
    %v490 = vsub.f32 %v448, %v486
    %v491 = vsub.f32 %v473, %v487
    %v492 = vsub.f32 %v480, %v488
    %v493 = vpack.c.bf16 %v489, %v489
    %v494 = vpack.c.bf16 %v490, %v490
    %v495 = vpack.c.bf16 %v491, %v491
    %v496 = vpack.c.bf16 %v492, %v492
    %v497 = vld [vmem:[#allocation2] sm:$0xff]
    %v498 = vld [vmem:[#allocation2 + $0x8] sm:$0xff]
    %v499 = vld [vmem:[#allocation2 + $0x10] sm:$0xff]
    %v500 = vld [vmem:[#allocation2 + $0x18] sm:$0xff]
    %v501 = vld [vmem:[#allocation2 + $0x20] sm:$0xff]
    %v502 = vld [vmem:[#allocation2 + $0x28] sm:$0xff]
    %v503 = vld [vmem:[#allocation2 + $0x30] sm:$0xff]
    %v504 = vld [vmem:[#allocation2 + $0x38] sm:$0xff]
    %v505 = vld [vmem:[#allocation2 + $0x40] sm:$0xff]
    %v506 = vld [vmem:[#allocation2 + $0x48] sm:$0xff]
    %v507 = vld [vmem:[#allocation2 + $0x50] sm:$0xff]
    %v508 = vld [vmem:[#allocation2 + $0x58] sm:$0xff]
    %v509 = vld [vmem:[#allocation2 + $0x60] sm:$0xff]
    %v510 = vld [vmem:[#allocation2 + $0x68] sm:$0xff]
    %v511 = vld [vmem:[#allocation2 + $0x70] sm:$0xff]
    %v512 = vld [vmem:[#allocation2 + $0x78] sm:$0xff]
    %v513 = vld [vmem:[#allocation2 + $0x80] sm:$0xff]
    %v514 = vld [vmem:[#allocation2 + $0x88] sm:$0xff]
    %v515 = vld [vmem:[#allocation2 + $0x90] sm:$0xff]
    %v516 = vld [vmem:[#allocation2 + $0x98] sm:$0xff]
    %v517 = vld [vmem:[#allocation2 + $0xa0] sm:$0xff]
    %v518 = vld [vmem:[#allocation2 + $0xa8] sm:$0xff]
    %v519 = vld [vmem:[#allocation2 + $0xb0] sm:$0xff]
    %v520 = vld [vmem:[#allocation2 + $0xb8] sm:$0xff]
    %v521 = vld [vmem:[#allocation2 + $0xc0] sm:$0xff]
    %v522 = vld [vmem:[#allocation2 + $0xc8] sm:$0xff]
    %v523 = vld [vmem:[#allocation2 + $0xd0] sm:$0xff]
    %v524 = vld [vmem:[#allocation2 + $0xd8] sm:$0xff]
    %v525 = vld [vmem:[#allocation2 + $0xe0] sm:$0xff]
    %v526 = vld [vmem:[#allocation2 + $0xe8] sm:$0xff]
    %v527 = vld [vmem:[#allocation2 + $0xf0] sm:$0xff]
    %v528 = vld [vmem:[#allocation2 + $0xf8] sm:$0xff]
    %v529 = vld [vmem:[#allocation2 + $0x100] sm:$0xff]
    %v530 = vld [vmem:[#allocation2 + $0x108] sm:$0xff]
    %v531 = vld [vmem:[#allocation2 + $0x110] sm:$0xff]
    %v532 = vld [vmem:[#allocation2 + $0x118] sm:$0xff]
    %v533 = vld [vmem:[#allocation2 + $0x120] sm:$0xff]
    %v534 = vld [vmem:[#allocation2 + $0x128] sm:$0xff]
    %v535 = vld [vmem:[#allocation2 + $0x130] sm:$0xff]
    %v536 = vld [vmem:[#allocation2 + $0x138] sm:$0xff]
    %v537 = vld [vmem:[#allocation2 + $0x140] sm:$0xff]
    %v538 = vld [vmem:[#allocation2 + $0x148] sm:$0xff]
    %v539 = vld [vmem:[#allocation2 + $0x150] sm:$0xff]
    %v540 = vld [vmem:[#allocation2 + $0x158] sm:$0xff]
    %v541 = vld [vmem:[#allocation2 + $0x160] sm:$0xff]
    %v542 = vld [vmem:[#allocation2 + $0x168] sm:$0xff]
    %v543 = vld [vmem:[#allocation2 + $0x170] sm:$0xff]
    %v544 = vld [vmem:[#allocation2 + $0x178] sm:$0xff]
    %v545 = vld [vmem:[#allocation2 + $0x180] sm:$0xff]
    %v546 = vld [vmem:[#allocation2 + $0x188] sm:$0xff]
    %v547 = vld [vmem:[#allocation2 + $0x190] sm:$0xff]
    %v548 = vld [vmem:[#allocation2 + $0x198] sm:$0xff]
    %v549 = vld [vmem:[#allocation2 + $0x1a0] sm:$0xff]
    %v550 = vld [vmem:[#allocation2 + $0x1a8] sm:$0xff]
    %v551 = vld [vmem:[#allocation2 + $0x1b0] sm:$0xff]
    %v552 = vld [vmem:[#allocation2 + $0x1b8] sm:$0xff]
    %v553 = vld [vmem:[#allocation2 + $0x1c0] sm:$0xff]
    %v554 = vld [vmem:[#allocation2 + $0x1c8] sm:$0xff]
    %v555 = vld [vmem:[#allocation2 + $0x1d0] sm:$0xff]
    %v556 = vld [vmem:[#allocation2 + $0x1d8] sm:$0xff]
    %v557 = vld [vmem:[#allocation2 + $0x1e0] sm:$0xff]
    %v558 = vld [vmem:[#allocation2 + $0x1e8] sm:$0xff]
    %v559 = vld [vmem:[#allocation2 + $0x1f0] sm:$0xff]
    %v560 = vld [vmem:[#allocation2 + $0x1f8] sm:$0xff]
    %v561 = vld [vmem:[#allocation5] sm:$0xff]
    %v562 = vld [vmem:[#allocation5 + $0x8] sm:$0xff]
    %v563 = vld [vmem:[#allocation5 + $0x10] sm:$0xff]
    %v564 = vld [vmem:[#allocation5 + $0x18] sm:$0xff]
    %v565 = vld [vmem:[#allocation5 + $0x20] sm:$0xff]
    %v566 = vld [vmem:[#allocation5 + $0x28] sm:$0xff]
    %v567 = vld [vmem:[#allocation5 + $0x30] sm:$0xff]
    %v568 = vld [vmem:[#allocation5 + $0x38] sm:$0xff]
    %v569 = vld [vmem:[#allocation5 + $0x40] sm:$0xff]
    %v570 = vld [vmem:[#allocation5 + $0x48] sm:$0xff]
    %v571 = vld [vmem:[#allocation5 + $0x50] sm:$0xff]
    %v572 = vld [vmem:[#allocation5 + $0x58] sm:$0xff]
    %v573 = vld [vmem:[#allocation5 + $0x60] sm:$0xff]
    %v574 = vld [vmem:[#allocation5 + $0x68] sm:$0xff]
    %v575 = vld [vmem:[#allocation5 + $0x70] sm:$0xff]
    %v576 = vld [vmem:[#allocation5 + $0x78] sm:$0xff]
    %v577 = vld [vmem:[#allocation5 + $0x80] sm:$0xff]
    %v578 = vld [vmem:[#allocation5 + $0x88] sm:$0xff]
    %v579 = vld [vmem:[#allocation5 + $0x90] sm:$0xff]
    %v580 = vld [vmem:[#allocation5 + $0x98] sm:$0xff]
    %v581 = vld [vmem:[#allocation5 + $0xa0] sm:$0xff]
    %v582 = vld [vmem:[#allocation5 + $0xa8] sm:$0xff]
    %v583 = vld [vmem:[#allocation5 + $0xb0] sm:$0xff]
    %v584 = vld [vmem:[#allocation5 + $0xb8] sm:$0xff]
    %v585 = vld [vmem:[#allocation5 + $0xc0] sm:$0xff]
    %v586 = vld [vmem:[#allocation5 + $0xc8] sm:$0xff]
    %v587 = vld [vmem:[#allocation5 + $0xd0] sm:$0xff]
    %v588 = vld [vmem:[#allocation5 + $0xd8] sm:$0xff]
    %v589 = vld [vmem:[#allocation5 + $0xe0] sm:$0xff]
    %v590 = vld [vmem:[#allocation5 + $0xe8] sm:$0xff]
    %v591 = vld [vmem:[#allocation5 + $0xf0] sm:$0xff]
    %v592 = vld [vmem:[#allocation5 + $0xf8] sm:$0xff]
    %v593 = vld [vmem:[#allocation5 + $0x100] sm:$0xff]
    %v594 = vld [vmem:[#allocation5 + $0x108] sm:$0xff]
    %v595 = vld [vmem:[#allocation5 + $0x110] sm:$0xff]
    %v596 = vld [vmem:[#allocation5 + $0x118] sm:$0xff]
    %v597 = vld [vmem:[#allocation5 + $0x120] sm:$0xff]
    %v598 = vld [vmem:[#allocation5 + $0x128] sm:$0xff]
    %v599 = vld [vmem:[#allocation5 + $0x130] sm:$0xff]
    %v600 = vld [vmem:[#allocation5 + $0x138] sm:$0xff]
    %v601 = vld [vmem:[#allocation5 + $0x140] sm:$0xff]
    %v602 = vld [vmem:[#allocation5 + $0x148] sm:$0xff]
    %v603 = vld [vmem:[#allocation5 + $0x150] sm:$0xff]
    %v604 = vld [vmem:[#allocation5 + $0x158] sm:$0xff]
    %v605 = vld [vmem:[#allocation5 + $0x160] sm:$0xff]
    %v606 = vld [vmem:[#allocation5 + $0x168] sm:$0xff]
    %v607 = vld [vmem:[#allocation5 + $0x170] sm:$0xff]
    %v608 = vld [vmem:[#allocation5 + $0x178] sm:$0xff]
    %v609 = vld [vmem:[#allocation5 + $0x180] sm:$0xff]
    %v610 = vld [vmem:[#allocation5 + $0x188] sm:$0xff]
    %v611 = vld [vmem:[#allocation5 + $0x190] sm:$0xff]
    %v612 = vld [vmem:[#allocation5 + $0x198] sm:$0xff]
    %v613 = vld [vmem:[#allocation5 + $0x1a0] sm:$0xff]
    %v614 = vld [vmem:[#allocation5 + $0x1a8] sm:$0xff]
    %v615 = vld [vmem:[#allocation5 + $0x1b0] sm:$0xff]
    %v616 = vld [vmem:[#allocation5 + $0x1b8] sm:$0xff]
    %v617 = vld [vmem:[#allocation5 + $0x1c0] sm:$0xff]
    %v618 = vld [vmem:[#allocation5 + $0x1c8] sm:$0xff]
    %v619 = vld [vmem:[#allocation5 + $0x1d0] sm:$0xff]
    %v620 = vld [vmem:[#allocation5 + $0x1d8] sm:$0xff]
    %v621 = vld [vmem:[#allocation5 + $0x1e0] sm:$0xff]
    %v622 = vld [vmem:[#allocation5 + $0x1e8] sm:$0xff]
    %v623 = vld [vmem:[#allocation5 + $0x1f0] sm:$0xff]
    %v624 = vld [vmem:[#allocation5 + $0x1f8] sm:$0xff]
    %v627 = vunpack.c.l.b16 %v483
    %v628 = vunpack.c.h.b16 %v483
    %v629 = vunpack.c.l.b16 %v484
    %v630 = vunpack.c.h.b16 %v484
    %v631 = vpack.c.b16 %v627, %v627
    %v632 = vpack.c.b16 %v628, %v628
    %v633 = vpack.c.b16 %v629, %v629
    %v634 = vpack.c.b16 %v630, %v630
    %v703 = vunpack.c.l.b16 %v561
    %v704 = vunpack.c.h.b16 %v561
    %v705 = vunpack.c.l.b16 %v562
    %v706 = vunpack.c.h.b16 %v562
    %v707 = vunpack.c.l.b16 %v563
    %v708 = vunpack.c.h.b16 %v563
    %v709 = vunpack.c.l.b16 %v564
    %v710 = vunpack.c.h.b16 %v564
    %v711 = vunpack.c.l.b16 %v565
    %v712 = vunpack.c.h.b16 %v565
    %v713 = vunpack.c.l.b16 %v566
    %v714 = vunpack.c.h.b16 %v566
    %v715 = vunpack.c.l.b16 %v567
    %v716 = vunpack.c.h.b16 %v567
    %v717 = vunpack.c.l.b16 %v568
    %v718 = vunpack.c.h.b16 %v568
    %v719 = vunpack.c.l.b16 %v569
    %v720 = vunpack.c.h.b16 %v569
    %v721 = vunpack.c.l.b16 %v570
    %v722 = vunpack.c.h.b16 %v570
    %v723 = vunpack.c.l.b16 %v571
    %v724 = vunpack.c.h.b16 %v571
    %v725 = vunpack.c.l.b16 %v572
    %v726 = vunpack.c.h.b16 %v572
    %v727 = vunpack.c.l.b16 %v573
    %v728 = vunpack.c.h.b16 %v573
    %v729 = vunpack.c.l.b16 %v574
    %v730 = vunpack.c.h.b16 %v574
    %v731 = vunpack.c.l.b16 %v575
    %v732 = vunpack.c.h.b16 %v575
    %v733 = vunpack.c.l.b16 %v576
    %v734 = vunpack.c.h.b16 %v576
    %v735 = vunpack.c.l.b16 %v577
    %v736 = vunpack.c.h.b16 %v577
    %v737 = vunpack.c.l.b16 %v578
    %v738 = vunpack.c.h.b16 %v578
    %v739 = vunpack.c.l.b16 %v579
    %v740 = vunpack.c.h.b16 %v579
    %v741 = vunpack.c.l.b16 %v580
    %v742 = vunpack.c.h.b16 %v580
    %v743 = vunpack.c.l.b16 %v581
    %v744 = vunpack.c.h.b16 %v581
    %v745 = vunpack.c.l.b16 %v582
    %v746 = vunpack.c.h.b16 %v582
    %v747 = vunpack.c.l.b16 %v583
    %v748 = vunpack.c.h.b16 %v583
    %v749 = vunpack.c.l.b16 %v584
    %v750 = vunpack.c.h.b16 %v584
    %v751 = vunpack.c.l.b16 %v585
    %v752 = vunpack.c.h.b16 %v585
    %v753 = vunpack.c.l.b16 %v586
    %v754 = vunpack.c.h.b16 %v586
    %v755 = vunpack.c.l.b16 %v587
    %v756 = vunpack.c.h.b16 %v587
    %v757 = vunpack.c.l.b16 %v588
    %v758 = vunpack.c.h.b16 %v588
    %v759 = vunpack.c.l.b16 %v589
    %v760 = vunpack.c.h.b16 %v589
    %v761 = vunpack.c.l.b16 %v590
    %v762 = vunpack.c.h.b16 %v590
    %v763 = vunpack.c.l.b16 %v591
    %v764 = vunpack.c.h.b16 %v591
    %v765 = vunpack.c.l.b16 %v592
    %v766 = vunpack.c.h.b16 %v592
    %v767 = vunpack.c.l.b16 %v593
    %v768 = vunpack.c.h.b16 %v593
    %v769 = vunpack.c.l.b16 %v594
    %v770 = vunpack.c.h.b16 %v594
    %v771 = vunpack.c.l.b16 %v595
    %v772 = vunpack.c.h.b16 %v595
    %v773 = vunpack.c.l.b16 %v596
    %v774 = vunpack.c.h.b16 %v596
    %v775 = vunpack.c.l.b16 %v597
    %v776 = vunpack.c.h.b16 %v597
    %v777 = vunpack.c.l.b16 %v598
    %v778 = vunpack.c.h.b16 %v598
    %v779 = vunpack.c.l.b16 %v599
    %v780 = vunpack.c.h.b16 %v599
    %v781 = vunpack.c.l.b16 %v600
    %v782 = vunpack.c.h.b16 %v600
    %v783 = vunpack.c.l.b16 %v601
    %v784 = vunpack.c.h.b16 %v601
    %v785 = vunpack.c.l.b16 %v602
    %v786 = vunpack.c.h.b16 %v602
    %v787 = vunpack.c.l.b16 %v603
    %v788 = vunpack.c.h.b16 %v603
    %v789 = vunpack.c.l.b16 %v604
    %v790 = vunpack.c.h.b16 %v604
    %v791 = vunpack.c.l.b16 %v605
    %v792 = vunpack.c.h.b16 %v605
    %v793 = vunpack.c.l.b16 %v606
    %v794 = vunpack.c.h.b16 %v606
    %v795 = vunpack.c.l.b16 %v607
    %v796 = vunpack.c.h.b16 %v607
    %v797 = vunpack.c.l.b16 %v608
    %v798 = vunpack.c.h.b16 %v608
    %v799 = vunpack.c.l.b16 %v609
    %v800 = vunpack.c.h.b16 %v609
    %v801 = vunpack.c.l.b16 %v610
    %v802 = vunpack.c.h.b16 %v610
    %v803 = vunpack.c.l.b16 %v611
    %v804 = vunpack.c.h.b16 %v611
    %v805 = vunpack.c.l.b16 %v612
    %v806 = vunpack.c.h.b16 %v612
    %v807 = vunpack.c.l.b16 %v613
    %v808 = vunpack.c.h.b16 %v613
    %v809 = vunpack.c.l.b16 %v614
    %v810 = vunpack.c.h.b16 %v614
    %v811 = vunpack.c.l.b16 %v615
    %v812 = vunpack.c.h.b16 %v615
    %v813 = vunpack.c.l.b16 %v616
    %v814 = vunpack.c.h.b16 %v616
    %v815 = vunpack.c.l.b16 %v617
    %v816 = vunpack.c.h.b16 %v617
    %v817 = vunpack.c.l.b16 %v618
    %v818 = vunpack.c.h.b16 %v618
    %v819 = vunpack.c.l.b16 %v619
    %v820 = vunpack.c.h.b16 %v619
    %v821 = vunpack.c.l.b16 %v620
    %v822 = vunpack.c.h.b16 %v620
    %v823 = vunpack.c.l.b16 %v621
    %v824 = vunpack.c.h.b16 %v621
    %v825 = vunpack.c.l.b16 %v622
    %v826 = vunpack.c.h.b16 %v622
    %v827 = vunpack.c.l.b16 %v623
    %v828 = vunpack.c.h.b16 %v623
    %v829 = vunpack.c.l.b16 %v624
    %v830 = vunpack.c.h.b16 %v624
    %v831 = vpack.c.b16 %v705, %v703
    %v832 = vpack.c.b16 %v706, %v704
    %v833 = vpack.c.b16 %v709, %v707
    %v834 = vpack.c.b16 %v710, %v708
    %v835 = vpack.c.b16 %v713, %v711
    %v836 = vpack.c.b16 %v714, %v712
    %v837 = vpack.c.b16 %v717, %v715
    %v838 = vpack.c.b16 %v718, %v716
    %v839 = vpack.c.b16 %v721, %v719
    %v840 = vpack.c.b16 %v722, %v720
    %v841 = vpack.c.b16 %v725, %v723
    %v842 = vpack.c.b16 %v726, %v724
    %v843 = vpack.c.b16 %v729, %v727
    %v844 = vpack.c.b16 %v730, %v728
    %v845 = vpack.c.b16 %v733, %v731
    %v846 = vpack.c.b16 %v734, %v732
    %v847 = vpack.c.b16 %v737, %v735
    %v848 = vpack.c.b16 %v738, %v736
    %v849 = vpack.c.b16 %v741, %v739
    %v850 = vpack.c.b16 %v742, %v740
    %v851 = vpack.c.b16 %v745, %v743
    %v852 = vpack.c.b16 %v746, %v744
    %v853 = vpack.c.b16 %v749, %v747
    %v854 = vpack.c.b16 %v750, %v748
    %v855 = vpack.c.b16 %v753, %v751
    %v856 = vpack.c.b16 %v754, %v752
    %v857 = vpack.c.b16 %v757, %v755
    %v858 = vpack.c.b16 %v758, %v756
    %v859 = vpack.c.b16 %v761, %v759
    %v860 = vpack.c.b16 %v762, %v760
    %v861 = vpack.c.b16 %v765, %v763
    %v862 = vpack.c.b16 %v766, %v764
    %v863 = vpack.c.b16 %v769, %v767
    %v864 = vpack.c.b16 %v770, %v768
    %v865 = vpack.c.b16 %v773, %v771
    %v866 = vpack.c.b16 %v774, %v772
    %v867 = vpack.c.b16 %v777, %v775
    %v868 = vpack.c.b16 %v778, %v776
    %v869 = vpack.c.b16 %v781, %v779
    %v870 = vpack.c.b16 %v782, %v780
    %v871 = vpack.c.b16 %v785, %v783
    %v872 = vpack.c.b16 %v786, %v784
    %v873 = vpack.c.b16 %v789, %v787
    %v874 = vpack.c.b16 %v790, %v788
    %v875 = vpack.c.b16 %v793, %v791
    %v876 = vpack.c.b16 %v794, %v792
    %v877 = vpack.c.b16 %v797, %v795
    %v878 = vpack.c.b16 %v798, %v796
    %v879 = vpack.c.b16 %v801, %v799
    %v880 = vpack.c.b16 %v802, %v800
    %v881 = vpack.c.b16 %v805, %v803
    %v882 = vpack.c.b16 %v806, %v804
    %v883 = vpack.c.b16 %v809, %v807
    %v884 = vpack.c.b16 %v810, %v808
    %v885 = vpack.c.b16 %v813, %v811
    %v886 = vpack.c.b16 %v814, %v812
    %v887 = vpack.c.b16 %v817, %v815
    %v888 = vpack.c.b16 %v818, %v816
    %v889 = vpack.c.b16 %v821, %v819
    %v890 = vpack.c.b16 %v822, %v820
    %v891 = vpack.c.b16 %v825, %v823
    %v892 = vpack.c.b16 %v826, %v824
    %v893 = vpack.c.b16 %v829, %v827
    %v894 = vpack.c.b16 %v830, %v828
    %959 = vmatpush.bf16.msra.mxu0 %v845
    %960 = vmatpush.bf16.msra.mxu0 %v843
    %961 = vmatpush.bf16.msra.mxu0 %v841
    %962 = vmatpush.bf16.msra.mxu0 %v839
    %963 = vmatpush.bf16.msra.mxu0 %v837
    %964 = vmatpush.bf16.msra.mxu0 %v835
    %965 = vmatpush.bf16.msra.mxu0 %v833
    %966 = vmatpush.bf16.msra.mxu0 %v831
    %967 = vmatmul.bf16.gmra.mxu0 %v631
    %v968 = vpop.f32.mrf.mxu0
    %v969 = vadd.f32 0.0, %v968
    %v970 = vpop.f32.mrf.mxu0
    %971 = vdwg.mxu0
    %972 = vmatpush.bf16.msra.mxu0 %v861
    %973 = vmatpush.bf16.msra.mxu0 %v859
    %974 = vmatpush.bf16.msra.mxu0 %v857
    %975 = vmatpush.bf16.msra.mxu0 %v855
    %976 = vmatpush.bf16.msra.mxu0 %v853
    %977 = vmatpush.bf16.msra.mxu0 %v851
    %978 = vmatpush.bf16.msra.mxu0 %v849
    %979 = vmatpush.bf16.msra.mxu0 %v847
    %980 = vmatmul.bf16.gmra.mxu0 %v632
    %v981 = vpop.f32.mrf.mxu0
    %v982 = vadd.f32 %v969, %v981
    %v983 = vpop.f32.mrf.mxu0
    %984 = vdwg.mxu0
    %985 = vmatpush.bf16.msra.mxu0 %v877
    %986 = vmatpush.bf16.msra.mxu0 %v875
    %987 = vmatpush.bf16.msra.mxu0 %v873
    %988 = vmatpush.bf16.msra.mxu0 %v871
    %989 = vmatpush.bf16.msra.mxu0 %v869
    %990 = vmatpush.bf16.msra.mxu0 %v867
    %991 = vmatpush.bf16.msra.mxu0 %v865
    %992 = vmatpush.bf16.msra.mxu0 %v863
    %993 = vmatmul.bf16.gmra.mxu0 %v633
    %v994 = vpop.f32.mrf.mxu0
    %v995 = vadd.f32 %v982, %v994
    %v996 = vpop.f32.mrf.mxu0
    %997 = vdwg.mxu0
    %998 = vmatpush.bf16.msra.mxu0 %v893
    %999 = vmatpush.bf16.msra.mxu0 %v891
    %1000 = vmatpush.bf16.msra.mxu0 %v889
    %1001 = vmatpush.bf16.msra.mxu0 %v887
    %1002 = vmatpush.bf16.msra.mxu0 %v885
    %1003 = vmatpush.bf16.msra.mxu0 %v883
    %1004 = vmatpush.bf16.msra.mxu0 %v881
    %1005 = vmatpush.bf16.msra.mxu0 %v879
    %1006 = vmatmul.bf16.gmra.mxu0 %v634
    %v1007 = vpop.f32.mrf.mxu0
    %v1008 = vadd.f32 %v995, %v1007
    %v1009 = vpop.f32.mrf.mxu0
    %1010 = vdwg.mxu0
    %1011 = vmatpush.bf16.msra.mxu0 %v846
    %1012 = vmatpush.bf16.msra.mxu0 %v844
    %1013 = vmatpush.bf16.msra.mxu0 %v842
    %1014 = vmatpush.bf16.msra.mxu0 %v840
    %1015 = vmatpush.bf16.msra.mxu0 %v838
    %1016 = vmatpush.bf16.msra.mxu0 %v836
    %1017 = vmatpush.bf16.msra.mxu0 %v834
    %1018 = vmatpush.bf16.msra.mxu0 %v832
    %1019 = vmatmul.bf16.gmra.mxu0 %v631
    %v1020 = vpop.f32.mrf.mxu0
    %v1021 = vadd.f32 0.0, %v1020
    %v1022 = vpop.f32.mrf.mxu0
    %1023 = vdwg.mxu0
    %1024 = vmatpush.bf16.msra.mxu0 %v862
    %1025 = vmatpush.bf16.msra.mxu0 %v860
    %1026 = vmatpush.bf16.msra.mxu0 %v858
    %1027 = vmatpush.bf16.msra.mxu0 %v856
    %1028 = vmatpush.bf16.msra.mxu0 %v854
    %1029 = vmatpush.bf16.msra.mxu0 %v852
    %1030 = vmatpush.bf16.msra.mxu0 %v850
    %1031 = vmatpush.bf16.msra.mxu0 %v848
    %1032 = vmatmul.bf16.gmra.mxu0 %v632
    %v1033 = vpop.f32.mrf.mxu0
    %v1034 = vadd.f32 %v1021, %v1033
    %v1035 = vpop.f32.mrf.mxu0
    %1036 = vdwg.mxu0
    %1037 = vmatpush.bf16.msra.mxu0 %v878
    %1038 = vmatpush.bf16.msra.mxu0 %v876
    %1039 = vmatpush.bf16.msra.mxu0 %v874
    %1040 = vmatpush.bf16.msra.mxu0 %v872
    %1041 = vmatpush.bf16.msra.mxu0 %v870
    %1042 = vmatpush.bf16.msra.mxu0 %v868
    %1043 = vmatpush.bf16.msra.mxu0 %v866
    %1044 = vmatpush.bf16.msra.mxu0 %v864
    %1045 = vmatmul.bf16.gmra.mxu0 %v633
    %v1046 = vpop.f32.mrf.mxu0
    %v1047 = vadd.f32 %v1034, %v1046
    %v1048 = vpop.f32.mrf.mxu0
    %1049 = vdwg.mxu0
    %1050 = vmatpush.bf16.msra.mxu0 %v894
    %1051 = vmatpush.bf16.msra.mxu0 %v892
    %1052 = vmatpush.bf16.msra.mxu0 %v890
    %1053 = vmatpush.bf16.msra.mxu0 %v888
    %1054 = vmatpush.bf16.msra.mxu0 %v886
    %1055 = vmatpush.bf16.msra.mxu0 %v884
    %1056 = vmatpush.bf16.msra.mxu0 %v882
    %1057 = vmatpush.bf16.msra.mxu0 %v880
    %1058 = vmatmul.bf16.gmra.mxu0 %v634
    %v1059 = vpop.f32.mrf.mxu0
    %v1060 = vadd.f32 %v1047, %v1059
    %v1061 = vpop.f32.mrf.mxu0
    %1062 = vdwg.mxu0
    %v1127 = vunpack.c.l.b16 %v497
    %v1128 = vunpack.c.h.b16 %v497
    %v1129 = vunpack.c.l.b16 %v498
    %v1130 = vunpack.c.h.b16 %v498
    %v1131 = vunpack.c.l.b16 %v499
    %v1132 = vunpack.c.h.b16 %v499
    %v1133 = vunpack.c.l.b16 %v500
    %v1134 = vunpack.c.h.b16 %v500
    %v1135 = vunpack.c.l.b16 %v501
    %v1136 = vunpack.c.h.b16 %v501
    %v1137 = vunpack.c.l.b16 %v502
    %v1138 = vunpack.c.h.b16 %v502
    %v1139 = vunpack.c.l.b16 %v503
    %v1140 = vunpack.c.h.b16 %v503
    %v1141 = vunpack.c.l.b16 %v504
    %v1142 = vunpack.c.h.b16 %v504
    %v1143 = vunpack.c.l.b16 %v505
    %v1144 = vunpack.c.h.b16 %v505
    %v1145 = vunpack.c.l.b16 %v506
    %v1146 = vunpack.c.h.b16 %v506
    %v1147 = vunpack.c.l.b16 %v507
    %v1148 = vunpack.c.h.b16 %v507
    %v1149 = vunpack.c.l.b16 %v508
    %v1150 = vunpack.c.h.b16 %v508
    %v1151 = vunpack.c.l.b16 %v509
    %v1152 = vunpack.c.h.b16 %v509
    %v1153 = vunpack.c.l.b16 %v510
    %v1154 = vunpack.c.h.b16 %v510
    %v1155 = vunpack.c.l.b16 %v511
    %v1156 = vunpack.c.h.b16 %v511
    %v1157 = vunpack.c.l.b16 %v512
    %v1158 = vunpack.c.h.b16 %v512
    %v1159 = vunpack.c.l.b16 %v513
    %v1160 = vunpack.c.h.b16 %v513
    %v1161 = vunpack.c.l.b16 %v514
    %v1162 = vunpack.c.h.b16 %v514
    %v1163 = vunpack.c.l.b16 %v515
    %v1164 = vunpack.c.h.b16 %v515
    %v1165 = vunpack.c.l.b16 %v516
    %v1166 = vunpack.c.h.b16 %v516
    %v1167 = vunpack.c.l.b16 %v517
    %v1168 = vunpack.c.h.b16 %v517
    %v1169 = vunpack.c.l.b16 %v518
    %v1170 = vunpack.c.h.b16 %v518
    %v1171 = vunpack.c.l.b16 %v519
    %v1172 = vunpack.c.h.b16 %v519
    %v1173 = vunpack.c.l.b16 %v520
    %v1174 = vunpack.c.h.b16 %v520
    %v1175 = vunpack.c.l.b16 %v521
    %v1176 = vunpack.c.h.b16 %v521
    %v1177 = vunpack.c.l.b16 %v522
    %v1178 = vunpack.c.h.b16 %v522
    %v1179 = vunpack.c.l.b16 %v523
    %v1180 = vunpack.c.h.b16 %v523
    %v1181 = vunpack.c.l.b16 %v524
    %v1182 = vunpack.c.h.b16 %v524
    %v1183 = vunpack.c.l.b16 %v525
    %v1184 = vunpack.c.h.b16 %v525
    %v1185 = vunpack.c.l.b16 %v526
    %v1186 = vunpack.c.h.b16 %v526
    %v1187 = vunpack.c.l.b16 %v527
    %v1188 = vunpack.c.h.b16 %v527
    %v1189 = vunpack.c.l.b16 %v528
    %v1190 = vunpack.c.h.b16 %v528
    %v1191 = vunpack.c.l.b16 %v529
    %v1192 = vunpack.c.h.b16 %v529
    %v1193 = vunpack.c.l.b16 %v530
    %v1194 = vunpack.c.h.b16 %v530
    %v1195 = vunpack.c.l.b16 %v531
    %v1196 = vunpack.c.h.b16 %v531
    %v1197 = vunpack.c.l.b16 %v532
    %v1198 = vunpack.c.h.b16 %v532
    %v1199 = vunpack.c.l.b16 %v533
    %v1200 = vunpack.c.h.b16 %v533
    %v1201 = vunpack.c.l.b16 %v534
    %v1202 = vunpack.c.h.b16 %v534
    %v1203 = vunpack.c.l.b16 %v535
    %v1204 = vunpack.c.h.b16 %v535
    %v1205 = vunpack.c.l.b16 %v536
    %v1206 = vunpack.c.h.b16 %v536
    %v1207 = vunpack.c.l.b16 %v537
    %v1208 = vunpack.c.h.b16 %v537
    %v1209 = vunpack.c.l.b16 %v538
    %v1210 = vunpack.c.h.b16 %v538
    %v1211 = vunpack.c.l.b16 %v539
    %v1212 = vunpack.c.h.b16 %v539
    %v1213 = vunpack.c.l.b16 %v540
    %v1214 = vunpack.c.h.b16 %v540
    %v1215 = vunpack.c.l.b16 %v541
    %v1216 = vunpack.c.h.b16 %v541
    %v1217 = vunpack.c.l.b16 %v542
    %v1218 = vunpack.c.h.b16 %v542
    %v1219 = vunpack.c.l.b16 %v543
    %v1220 = vunpack.c.h.b16 %v543
    %v1221 = vunpack.c.l.b16 %v544
    %v1222 = vunpack.c.h.b16 %v544
    %v1223 = vunpack.c.l.b16 %v545
    %v1224 = vunpack.c.h.b16 %v545
    %v1225 = vunpack.c.l.b16 %v546
    %v1226 = vunpack.c.h.b16 %v546
    %v1227 = vunpack.c.l.b16 %v547
    %v1228 = vunpack.c.h.b16 %v547
    %v1229 = vunpack.c.l.b16 %v548
    %v1230 = vunpack.c.h.b16 %v548
    %v1231 = vunpack.c.l.b16 %v549
    %v1232 = vunpack.c.h.b16 %v549
    %v1233 = vunpack.c.l.b16 %v550
    %v1234 = vunpack.c.h.b16 %v550
    %v1235 = vunpack.c.l.b16 %v551
    %v1236 = vunpack.c.h.b16 %v551
    %v1237 = vunpack.c.l.b16 %v552
    %v1238 = vunpack.c.h.b16 %v552
    %v1239 = vunpack.c.l.b16 %v553
    %v1240 = vunpack.c.h.b16 %v553
    %v1241 = vunpack.c.l.b16 %v554
    %v1242 = vunpack.c.h.b16 %v554
    %v1243 = vunpack.c.l.b16 %v555
    %v1244 = vunpack.c.h.b16 %v555
    %v1245 = vunpack.c.l.b16 %v556
    %v1246 = vunpack.c.h.b16 %v556
    %v1247 = vunpack.c.l.b16 %v557
    %v1248 = vunpack.c.h.b16 %v557
    %v1249 = vunpack.c.l.b16 %v558
    %v1250 = vunpack.c.h.b16 %v558
    %v1251 = vunpack.c.l.b16 %v559
    %v1252 = vunpack.c.h.b16 %v559
    %v1253 = vunpack.c.l.b16 %v560
    %v1254 = vunpack.c.h.b16 %v560
    %v1255 = vpack.c.b16 %v1129, %v1127
    %v1256 = vpack.c.b16 %v1130, %v1128
    %v1257 = vpack.c.b16 %v1133, %v1131
    %v1258 = vpack.c.b16 %v1134, %v1132
    %v1259 = vpack.c.b16 %v1137, %v1135
    %v1260 = vpack.c.b16 %v1138, %v1136
    %v1261 = vpack.c.b16 %v1141, %v1139
    %v1262 = vpack.c.b16 %v1142, %v1140
    %v1263 = vpack.c.b16 %v1145, %v1143
    %v1264 = vpack.c.b16 %v1146, %v1144
    %v1265 = vpack.c.b16 %v1149, %v1147
    %v1266 = vpack.c.b16 %v1150, %v1148
    %v1267 = vpack.c.b16 %v1153, %v1151
    %v1268 = vpack.c.b16 %v1154, %v1152
    %v1269 = vpack.c.b16 %v1157, %v1155
    %v1270 = vpack.c.b16 %v1158, %v1156
    %v1271 = vpack.c.b16 %v1161, %v1159
    %v1272 = vpack.c.b16 %v1162, %v1160
    %v1273 = vpack.c.b16 %v1165, %v1163
    %v1274 = vpack.c.b16 %v1166, %v1164
    %v1275 = vpack.c.b16 %v1169, %v1167
    %v1276 = vpack.c.b16 %v1170, %v1168
    %v1277 = vpack.c.b16 %v1173, %v1171
    %v1278 = vpack.c.b16 %v1174, %v1172
    %v1279 = vpack.c.b16 %v1177, %v1175
    %v1280 = vpack.c.b16 %v1178, %v1176
    %v1281 = vpack.c.b16 %v1181, %v1179
    %v1282 = vpack.c.b16 %v1182, %v1180
    %v1283 = vpack.c.b16 %v1185, %v1183
    %v1284 = vpack.c.b16 %v1186, %v1184
    %v1285 = vpack.c.b16 %v1189, %v1187
    %v1286 = vpack.c.b16 %v1190, %v1188
    %v1287 = vpack.c.b16 %v1193, %v1191
    %v1288 = vpack.c.b16 %v1194, %v1192
    %v1289 = vpack.c.b16 %v1197, %v1195
    %v1290 = vpack.c.b16 %v1198, %v1196
    %v1291 = vpack.c.b16 %v1201, %v1199
    %v1292 = vpack.c.b16 %v1202, %v1200
    %v1293 = vpack.c.b16 %v1205, %v1203
    %v1294 = vpack.c.b16 %v1206, %v1204
    %v1295 = vpack.c.b16 %v1209, %v1207
    %v1296 = vpack.c.b16 %v1210, %v1208
    %v1297 = vpack.c.b16 %v1213, %v1211
    %v1298 = vpack.c.b16 %v1214, %v1212
    %v1299 = vpack.c.b16 %v1217, %v1215
    %v1300 = vpack.c.b16 %v1218, %v1216
    %v1301 = vpack.c.b16 %v1221, %v1219
    %v1302 = vpack.c.b16 %v1222, %v1220
    %v1303 = vpack.c.b16 %v1225, %v1223
    %v1304 = vpack.c.b16 %v1226, %v1224
    %v1305 = vpack.c.b16 %v1229, %v1227
    %v1306 = vpack.c.b16 %v1230, %v1228
    %v1307 = vpack.c.b16 %v1233, %v1231
    %v1308 = vpack.c.b16 %v1234, %v1232
    %v1309 = vpack.c.b16 %v1237, %v1235
    %v1310 = vpack.c.b16 %v1238, %v1236
    %v1311 = vpack.c.b16 %v1241, %v1239
    %v1312 = vpack.c.b16 %v1242, %v1240
    %v1313 = vpack.c.b16 %v1245, %v1243
    %v1314 = vpack.c.b16 %v1246, %v1244
    %v1315 = vpack.c.b16 %v1249, %v1247
    %v1316 = vpack.c.b16 %v1250, %v1248
    %v1317 = vpack.c.b16 %v1253, %v1251
    %v1318 = vpack.c.b16 %v1254, %v1252
    %1383 = vmatpush.bf16.msra.mxu0 %v1269
    %1384 = vmatpush.bf16.msra.mxu0 %v1267
    %1385 = vmatpush.bf16.msra.mxu0 %v1265
    %1386 = vmatpush.bf16.msra.mxu0 %v1263
    %1387 = vmatpush.bf16.msra.mxu0 %v1261
    %1388 = vmatpush.bf16.msra.mxu0 %v1259
    %1389 = vmatpush.bf16.msra.mxu0 %v1257
    %1390 = vmatpush.bf16.msra.mxu0 %v1255
    %1391 = vmatmul.bf16.gmra.mxu0 %v631
    %v1392 = vpop.f32.mrf.mxu0
    %v1393 = vadd.f32 %v1008, %v1392
    %v1394 = vpop.f32.mrf.mxu0
    %1395 = vdwg.mxu0
    %1396 = vmatpush.bf16.msra.mxu0 %v1285
    %1397 = vmatpush.bf16.msra.mxu0 %v1283
    %1398 = vmatpush.bf16.msra.mxu0 %v1281
    %1399 = vmatpush.bf16.msra.mxu0 %v1279
    %1400 = vmatpush.bf16.msra.mxu0 %v1277
    %1401 = vmatpush.bf16.msra.mxu0 %v1275
    %1402 = vmatpush.bf16.msra.mxu0 %v1273
    %1403 = vmatpush.bf16.msra.mxu0 %v1271
    %1404 = vmatmul.bf16.gmra.mxu0 %v632
    %v1405 = vpop.f32.mrf.mxu0
    %v1406 = vadd.f32 %v1393, %v1405
    %v1407 = vpop.f32.mrf.mxu0
    %1408 = vdwg.mxu0
    %1409 = vmatpush.bf16.msra.mxu0 %v1301
    %1410 = vmatpush.bf16.msra.mxu0 %v1299
    %1411 = vmatpush.bf16.msra.mxu0 %v1297
    %1412 = vmatpush.bf16.msra.mxu0 %v1295
    %1413 = vmatpush.bf16.msra.mxu0 %v1293
    %1414 = vmatpush.bf16.msra.mxu0 %v1291
    %1415 = vmatpush.bf16.msra.mxu0 %v1289
    %1416 = vmatpush.bf16.msra.mxu0 %v1287
    %1417 = vmatmul.bf16.gmra.mxu0 %v633
    %v1418 = vpop.f32.mrf.mxu0
    %v1419 = vadd.f32 %v1406, %v1418
    %v1420 = vpop.f32.mrf.mxu0
    %1421 = vdwg.mxu0
    %1422 = vmatpush.bf16.msra.mxu0 %v1317
    %1423 = vmatpush.bf16.msra.mxu0 %v1315
    %1424 = vmatpush.bf16.msra.mxu0 %v1313
    %1425 = vmatpush.bf16.msra.mxu0 %v1311
    %1426 = vmatpush.bf16.msra.mxu0 %v1309
    %1427 = vmatpush.bf16.msra.mxu0 %v1307
    %1428 = vmatpush.bf16.msra.mxu0 %v1305
    %1429 = vmatpush.bf16.msra.mxu0 %v1303
    %1430 = vmatmul.bf16.gmra.mxu0 %v634
    %v1431 = vpop.f32.mrf.mxu0
    %v1432 = vadd.f32 %v1419, %v1431
    %v1433 = vpop.f32.mrf.mxu0
    %1434 = vdwg.mxu0
    %1435 = vmatpush.bf16.msra.mxu0 %v1270
    %1436 = vmatpush.bf16.msra.mxu0 %v1268
    %1437 = vmatpush.bf16.msra.mxu0 %v1266
    %1438 = vmatpush.bf16.msra.mxu0 %v1264
    %1439 = vmatpush.bf16.msra.mxu0 %v1262
    %1440 = vmatpush.bf16.msra.mxu0 %v1260
    %1441 = vmatpush.bf16.msra.mxu0 %v1258
    %1442 = vmatpush.bf16.msra.mxu0 %v1256
    %1443 = vmatmul.bf16.gmra.mxu0 %v631
    %v1444 = vpop.f32.mrf.mxu0
    %v1445 = vadd.f32 %v1060, %v1444
    %v1446 = vpop.f32.mrf.mxu0
    %1447 = vdwg.mxu0
    %1448 = vmatpush.bf16.msra.mxu0 %v1286
    %1449 = vmatpush.bf16.msra.mxu0 %v1284
    %1450 = vmatpush.bf16.msra.mxu0 %v1282
    %1451 = vmatpush.bf16.msra.mxu0 %v1280
    %1452 = vmatpush.bf16.msra.mxu0 %v1278
    %1453 = vmatpush.bf16.msra.mxu0 %v1276
    %1454 = vmatpush.bf16.msra.mxu0 %v1274
    %1455 = vmatpush.bf16.msra.mxu0 %v1272
    %1456 = vmatmul.bf16.gmra.mxu0 %v632
    %v1457 = vpop.f32.mrf.mxu0
    %v1458 = vadd.f32 %v1445, %v1457
    %v1459 = vpop.f32.mrf.mxu0
    %1460 = vdwg.mxu0
    %1461 = vmatpush.bf16.msra.mxu0 %v1302
    %1462 = vmatpush.bf16.msra.mxu0 %v1300
    %1463 = vmatpush.bf16.msra.mxu0 %v1298
    %1464 = vmatpush.bf16.msra.mxu0 %v1296
    %1465 = vmatpush.bf16.msra.mxu0 %v1294
    %1466 = vmatpush.bf16.msra.mxu0 %v1292
    %1467 = vmatpush.bf16.msra.mxu0 %v1290
    %1468 = vmatpush.bf16.msra.mxu0 %v1288
    %1469 = vmatmul.bf16.gmra.mxu0 %v633
    %v1470 = vpop.f32.mrf.mxu0
    %v1471 = vadd.f32 %v1458, %v1470
    %v1472 = vpop.f32.mrf.mxu0
    %1473 = vdwg.mxu0
    %1474 = vmatpush.bf16.msra.mxu0 %v1318
    %1475 = vmatpush.bf16.msra.mxu0 %v1316
    %1476 = vmatpush.bf16.msra.mxu0 %v1314
    %1477 = vmatpush.bf16.msra.mxu0 %v1312
    %1478 = vmatpush.bf16.msra.mxu0 %v1310
    %1479 = vmatpush.bf16.msra.mxu0 %v1308
    %1480 = vmatpush.bf16.msra.mxu0 %v1306
    %1481 = vmatpush.bf16.msra.mxu0 %v1304
    %1482 = vmatmul.bf16.gmra.mxu0 %v634
    %v1483 = vpop.f32.mrf.mxu0
    %v1484 = vadd.f32 %v1471, %v1483
    %v1485 = vpop.f32.mrf.mxu0
    %1486 = vdwg.mxu0
    %1487 = vmatpush.bf16.msra.mxu0 %v1269
    %1488 = vmatpush.bf16.msra.mxu0 %v1267
    %1489 = vmatpush.bf16.msra.mxu0 %v1265
    %1490 = vmatpush.bf16.msra.mxu0 %v1263
    %1491 = vmatpush.bf16.msra.mxu0 %v1261
    %1492 = vmatpush.bf16.msra.mxu0 %v1259
    %1493 = vmatpush.bf16.msra.mxu0 %v1257
    %1494 = vmatpush.bf16.msra.mxu0 %v1255
    %1495 = vmatmul.bf16.gmra.mxu0 %v493
    %v1496 = vpop.f32.mrf.mxu0
    %v1497 = vadd.f32 0.0, %v1496
    %v1498 = vpop.f32.mrf.mxu0
    %1499 = vdwg.mxu0
    %1500 = vmatpush.bf16.msra.mxu0 %v1285
    %1501 = vmatpush.bf16.msra.mxu0 %v1283
    %1502 = vmatpush.bf16.msra.mxu0 %v1281
    %1503 = vmatpush.bf16.msra.mxu0 %v1279
    %1504 = vmatpush.bf16.msra.mxu0 %v1277
    %1505 = vmatpush.bf16.msra.mxu0 %v1275
    %1506 = vmatpush.bf16.msra.mxu0 %v1273
    %1507 = vmatpush.bf16.msra.mxu0 %v1271
    %1508 = vmatmul.bf16.gmra.mxu0 %v494
    %v1509 = vpop.f32.mrf.mxu0
    %v1510 = vadd.f32 %v1497, %v1509
    %v1511 = vpop.f32.mrf.mxu0
    %1512 = vdwg.mxu0
    %1513 = vmatpush.bf16.msra.mxu0 %v1301
    %1514 = vmatpush.bf16.msra.mxu0 %v1299
    %1515 = vmatpush.bf16.msra.mxu0 %v1297
    %1516 = vmatpush.bf16.msra.mxu0 %v1295
    %1517 = vmatpush.bf16.msra.mxu0 %v1293
    %1518 = vmatpush.bf16.msra.mxu0 %v1291
    %1519 = vmatpush.bf16.msra.mxu0 %v1289
    %1520 = vmatpush.bf16.msra.mxu0 %v1287
    %1521 = vmatmul.bf16.gmra.mxu0 %v495
    %v1522 = vpop.f32.mrf.mxu0
    %v1523 = vadd.f32 %v1510, %v1522
    %v1524 = vpop.f32.mrf.mxu0
    %1525 = vdwg.mxu0
    %1526 = vmatpush.bf16.msra.mxu0 %v1317
    %1527 = vmatpush.bf16.msra.mxu0 %v1315
    %1528 = vmatpush.bf16.msra.mxu0 %v1313
    %1529 = vmatpush.bf16.msra.mxu0 %v1311
    %1530 = vmatpush.bf16.msra.mxu0 %v1309
    %1531 = vmatpush.bf16.msra.mxu0 %v1307
    %1532 = vmatpush.bf16.msra.mxu0 %v1305
    %1533 = vmatpush.bf16.msra.mxu0 %v1303
    %1534 = vmatmul.bf16.gmra.mxu0 %v496
    %v1535 = vpop.f32.mrf.mxu0
    %v1536 = vadd.f32 %v1523, %v1535
    %v1537 = vpop.f32.mrf.mxu0
    %1538 = vdwg.mxu0
    %1539 = vmatpush.bf16.msra.mxu0 %v1270
    %1540 = vmatpush.bf16.msra.mxu0 %v1268
    %1541 = vmatpush.bf16.msra.mxu0 %v1266
    %1542 = vmatpush.bf16.msra.mxu0 %v1264
    %1543 = vmatpush.bf16.msra.mxu0 %v1262
    %1544 = vmatpush.bf16.msra.mxu0 %v1260
    %1545 = vmatpush.bf16.msra.mxu0 %v1258
    %1546 = vmatpush.bf16.msra.mxu0 %v1256
    %1547 = vmatmul.bf16.gmra.mxu0 %v493
    %v1548 = vpop.f32.mrf.mxu0
    %v1549 = vadd.f32 0.0, %v1548
    %v1550 = vpop.f32.mrf.mxu0
    %1551 = vdwg.mxu0
    %1552 = vmatpush.bf16.msra.mxu0 %v1286
    %1553 = vmatpush.bf16.msra.mxu0 %v1284
    %1554 = vmatpush.bf16.msra.mxu0 %v1282
    %1555 = vmatpush.bf16.msra.mxu0 %v1280
    %1556 = vmatpush.bf16.msra.mxu0 %v1278
    %1557 = vmatpush.bf16.msra.mxu0 %v1276
    %1558 = vmatpush.bf16.msra.mxu0 %v1274
    %1559 = vmatpush.bf16.msra.mxu0 %v1272
    %1560 = vmatmul.bf16.gmra.mxu0 %v494
    %v1561 = vpop.f32.mrf.mxu0
    %v1562 = vadd.f32 %v1549, %v1561
    %v1563 = vpop.f32.mrf.mxu0
    %1564 = vdwg.mxu0
    %1565 = vmatpush.bf16.msra.mxu0 %v1302
    %1566 = vmatpush.bf16.msra.mxu0 %v1300
    %1567 = vmatpush.bf16.msra.mxu0 %v1298
    %1568 = vmatpush.bf16.msra.mxu0 %v1296
    %1569 = vmatpush.bf16.msra.mxu0 %v1294
    %1570 = vmatpush.bf16.msra.mxu0 %v1292
    %1571 = vmatpush.bf16.msra.mxu0 %v1290
    %1572 = vmatpush.bf16.msra.mxu0 %v1288
    %1573 = vmatmul.bf16.gmra.mxu0 %v495
    %v1574 = vpop.f32.mrf.mxu0
    %v1575 = vadd.f32 %v1562, %v1574
    %v1576 = vpop.f32.mrf.mxu0
    %1577 = vdwg.mxu0
    %1578 = vmatpush.bf16.msra.mxu0 %v1318
    %1579 = vmatpush.bf16.msra.mxu0 %v1316
    %1580 = vmatpush.bf16.msra.mxu0 %v1314
    %1581 = vmatpush.bf16.msra.mxu0 %v1312
    %1582 = vmatpush.bf16.msra.mxu0 %v1310
    %1583 = vmatpush.bf16.msra.mxu0 %v1308
    %1584 = vmatpush.bf16.msra.mxu0 %v1306
    %1585 = vmatpush.bf16.msra.mxu0 %v1304
    %1586 = vmatmul.bf16.gmra.mxu0 %v496
    %v1587 = vpop.f32.mrf.mxu0
    %v1588 = vadd.f32 %v1575, %v1587
    %v1589 = vpop.f32.mrf.mxu0
    %1590 = vdwg.mxu0
    %v1591 = vadd.f32 %v1432, %v1536
    %v1592 = vadd.f32 %v1484, %v1588
    %v1593 = vsub.f32 0.0, %v1591
    %v1594 = vsub.f32 0.0, %v1592
    %v1595 = vmul.f32 %v1593, 1.442695
    %v1596 = vpow.pop %v1595
    %v1597 = vmul.f32 %v1594, 1.442695
    %v1598 = vpow.pop %v1597
    %v1599 = vadd.f32 %v1596, 1.0
    %v1600 = vadd.f32 %v1598, 1.0
    %v1601 = vrcp.pop %v1599
    %v1602 = vmul.f32 %v1599, %v1601
    %v1603 = vsub.f32 1.0, %v1602
    %v1604 = vmul.f32 %v1601, %v1603
    %v1605 = vadd.f32 %v1601, %v1604
    %vm1606 = vweird.f32 %v1599
    %vm1607 = vweird.f32 %v1601
    %vm1608 = vmor %vm1606, %vm1607
    %v1609 = vsel %vm1608, %v1601, %v1605
    %v1610 = vand.u32 2147483647, %v1599
    %vm1611 = vcmp.eq.f32.partialorder %v1610, 8.507059e+37
    %v1612 = vand.u32 %v1599, 2147483648
    %v1613 = vor.u32 1.1754944e-38, %v1612
    %v1614 = vsel %vm1611, %v1613, %v1609
    %v1615 = vmul.f32 1.0, %v1614
    %v1616 = vrcp.pop %v1600
    %v1617 = vmul.f32 %v1600, %v1616
    %v1618 = vsub.f32 1.0, %v1617
    %v1619 = vmul.f32 %v1616, %v1618
    %v1620 = vadd.f32 %v1616, %v1619
    %vm1621 = vweird.f32 %v1600
    %vm1622 = vweird.f32 %v1616
    %vm1623 = vmor %vm1621, %vm1622
    %v1624 = vsel %vm1623, %v1616, %v1620
    %v1625 = vand.u32 2147483647, %v1600
    %vm1626 = vcmp.eq.f32.partialorder %v1625, 8.507059e+37
    %v1627 = vand.u32 %v1600, 2147483648
    %v1628 = vor.u32 1.1754944e-38, %v1627
    %v1629 = vsel %vm1626, %v1628, %v1624
    %v1630 = vmul.f32 1.0, %v1629
    %v1633 = vrot.slane %v1630, 7
    %vm1634 = vcmask 1040384
    %v1635 = vsel %vm1634, %v1615, %v1633
    %v1636 = vsel %vm428, %v1615, %v1633
    %v1637 = vrot.slane %v1636, 1
    %v1638 = vsel %vm430, %v1615, %v1633
    %v1639 = vrot.slane %v1638, 2
    %v1640 = vsel %vm432, %v1615, %v1633
    %v1641 = vrot.slane %v1640, 3
    %v1642 = vsel %vm434, %v1615, %v1633
    %v1643 = vrot.slane %v1642, 4
    %v1644 = vsel %vm436, %v1615, %v1633
    %v1645 = vrot.slane %v1644, 5
    %v1646 = vsel %vm438, %v1615, %v1633
    %v1647 = vrot.slane %v1646, 6
    %vm1648 = vcmask 1046528
    %v1649 = vsel %vm1648, %v1633, %v1615
    %v1650 = vrot.slane %v1649, 7
    %v1651 = vperm.slane %v1635, 0
    %v1652 = vperm.slane %v1635, 1
    %v1653 = vperm.slane %v1637, 0
    %v1654 = vperm.slane %v1637, 1
    %v1655 = vperm.slane %v1639, 0
    %v1656 = vperm.slane %v1639, 1
    %v1657 = vperm.slane %v1641, 0
    %v1658 = vperm.slane %v1641, 1
    %v1659 = vperm.slane %v1643, 0
    %v1660 = vperm.slane %v1643, 1
    %v1661 = vperm.slane %v1645, 0
    %v1662 = vperm.slane %v1645, 1
    %v1663 = vperm.slane %v1647, 0
    %v1664 = vperm.slane %v1647, 1
    %v1665 = vperm.slane %v1650, 0
    %v1666 = vperm.slane %v1650, 1
    %v1667 = vrot.slane %v1652, 4
    %v1668 = vrot.slane %v1654, 4
    %v1669 = vrot.slane %v1656, 4
    %v1670 = vrot.slane %v1658, 4
    %v1671 = vrot.slane %v1660, 4
    %v1672 = vrot.slane %v1662, 4
    %v1673 = vrot.slane %v1664, 4
    %v1674 = vrot.slane %v1666, 4
    %v1675 = vsel %vm121, %v1651, %v1667
    %v1676 = vsel %vm121, %v1653, %v1668
    %v1677 = vsel %vm121, %v1655, %v1669
    %v1678 = vsel %vm121, %v1657, %v1670
    %v1679 = vsel %vm121, %v1659, %v1671
    %v1680 = vsel %vm121, %v1661, %v1672
    %v1681 = vsel %vm121, %v1663, %v1673
    %v1682 = vsel %vm121, %v1665, %v1674
    %v1691 = vmul.f32 %v62, %v1675
    %v1692 = vmul.f32 %v63, %v1676
    %v1693 = vmul.f32 %v64, %v1677
    %v1694 = vmul.f32 %v65, %v1678
    %v1695 = vmul.f32 %v66, %v1679
    %v1696 = vmul.f32 %v67, %v1680
    %v1697 = vmul.f32 %v68, %v1681
    %v1698 = vmul.f32 %v69, %v1682
    %1699 = vst [vmem:[#allocation8] sm:$0xff] %v1691
    %1700 = vst [vmem:[#allocation8 + $0x8] sm:$0xff] %v1692
    %1701 = vst [vmem:[#allocation8 + $0x10] sm:$0xff] %v1693
    %1702 = vst [vmem:[#allocation8 + $0x18] sm:$0xff] %v1694
    %1703 = vst [vmem:[#allocation8 + $0x20] sm:$0xff] %v1695
    %1704 = vst [vmem:[#allocation8 + $0x28] sm:$0xff] %v1696
    %1705 = vst [vmem:[#allocation8 + $0x30] sm:$0xff] %v1697
    %1706 = vst [vmem:[#allocation8 + $0x38] sm:$0xff] %v1698
    // Predicated region
    $region26: #{tpu_custom_call.1} parent=1 // pred_check
      _
    $region27: #{tpu_custom_call.1} parent=1 // pred_check_branch
      %1708 = sbr.rel (0) target = $region29
    $region28: #{tpu_custom_call.1} parent=1 // pred_region
      %1710 = vsyncadd [#allocation4], 0
      %s1711 = sshll.u32 [#allocation8], 4
      %s1712 = int_to_ptr.vmem [resolvable:$true] %s1711
      %s1713 = sshll.u32 %s3, 4
      %s1714 = int_to_ptr.hbm [resolvable:$true] %s1713
      %1719 = dma.vmem_to_hbm [thread:$0]  %s1712, 1024, %s1714, [#allocation4], 128, 128, 8
    $region29: #{tpu_custom_call.1} parent=1 // pred_fallthru
      _
    // Predicated region
    $region30: #{tpu_custom_call.1} parent=1 // pred_check
      _
    $region31: #{tpu_custom_call.1} parent=1 // pred_check_branch
      %1721 = sbr.rel (0) target = $region33
    $region32: #{tpu_custom_call.1} parent=1 // pred_region
      %1723 = dma.done [#allocation4], 1024
    $region33: #{tpu_custom_call.1} parent=1 // pred_fallthru
      _
    %1724 = vsyncpa [#allocation3], 1
    %1725 = vsyncpa [#allocation6], 1
    %1726 = vsyncpa [#allocation4], 1

</llo_original>
